<compile_context>
chip_gen: v5e
topology: v5e:2x2
jax: 0.10.0
libtpu: 0.0.40
codegen_flags: <defaults>
</compile_context>

<pallas_src>
import numpy as np
import jax
import jax.numpy as jnp
from jax.experimental import pallas as pl
from jax.experimental.pallas import tpu as pltpu

# ----------------------------- configuration ------------------------------ #
N_CHANNELS = 8                      # n_channels of DecoderBlock
STRIDE = 2                          # stride of DecoderBlock
BATCH = 2
L_IN = 16                           # input sequence length

CH = N_CHANNELS // 2                # channels after the transposed conv
L_UP = (L_IN - 1) * STRIDE          # ConvTranspose1d output length ('same')
KSIZE = 7
DILATIONS = (1, 3, 9)
PAD_W = 128                         # padded time axis -> one (8,128) tile row-group
PAD_OFF = 32                        # interior start; halo >= (KSIZE//2)*max(dil)=27


def _elu(x):
    # ELU(alpha=1): x if x > 0 else exp(x) - 1 (exp arg clamped for safety).
    # exp(x)-1 (not expm1) is the proven Mosaic lowering; the tiny extra
    # rounding near x == 0 is well inside the test tolerance.
    return jnp.where(x > 0, x, jnp.exp(jnp.minimum(x, 0.0)) - 1.0)


# ------------------------------ fused kernel ------------------------------- #
def decoder_kernel(x_ref, wup_ref, sup_ref, bup_ref,
                   w0_ref, b0_ref, w1_ref, b1_ref,
                   o_ref, pad_ref):
    # x_ref  : (1, C, L_IN)        one batch element, channels on sublanes,
    #                              time on lanes (raw NCL layout, no pre-gather)
    # wup_ref: (2s, CH, C)         ConvTranspose1d per-tap weights, transposed
    # sup_ref: (2s, L_IN, L_UP)    0/1 time-scatter matrices (tap k -> output t)
    # bup_ref: (CH, 1)
    # w0_ref : (3, KSIZE, CH, CH)  ResNet conv0 per-tap weights (out, in)
    # b0_ref : (3, CH, 1)
    # w1_ref : (3, CH, CH)         ResNet conv1 (1x1) weights
    # b1_ref : (3, CH, 1)
    # o_ref  : (1, CH, L_UP)
    # pad_ref: VMEM scratch (CH, PAD_W) — zero halos emulate 'same' padding
    ch = o_ref.shape[1]
    l_up = o_ref.shape[2]
    half = KSIZE // 2
    n_tap_up = wup_ref.shape[0]                     # 2*stride

    # Zero the padded scratch once per grid step (one vreg store); only the
    # interior [PAD_OFF, PAD_OFF+l_up) is ever rewritten afterwards.
    pad_ref[...] = jnp.zeros(pad_ref.shape, jnp.float32)

    x = x_ref[0]                                    # (C, L_IN)

    # --- ConvTranspose1d (+bias) + ELU ------------------------------------ #
    # h[co, t] = sum_k  W_k^T @ x @ S_k   (+ bias), time stays on lanes.
    acc = jnp.zeros((ch, l_up), jnp.float32)
    for k in range(n_tap_up):
        xt = jnp.dot(x, sup_ref[k], preferred_element_type=jnp.float32)   # (C, l_up)
        acc = acc + jnp.dot(wup_ref[k], xt, preferred_element_type=jnp.float32)
    h = _elu(acc + bup_ref[...])                    # (ch, l_up); bias (ch,1) broadcasts

    # --- 3 x ResNet1d(k=7, dilation d, 'same') ---------------------------- #
    for i, d in enumerate(DILATIONS):
        pad_ref[:, pl.ds(PAD_OFF, l_up)] = h        # interior write, halos stay zero
        hp = pad_ref[...]                           # (ch, PAD_W) single row-group load
        acc = jnp.zeros((ch, l_up), jnp.float32)
        for k in range(KSIZE):
            lo = PAD_OFF + (k - half) * d           # static lane offset, always in-bounds
            tap = hp[:, lo:lo + l_up]               # lane slice -> XLU lane rotate
            acc = acc + jnp.dot(w0_ref[i, k], tap, preferred_element_type=jnp.float32)
        a = _elu(acc + b0_ref[i])                   # conv0 + ELU
        o = jnp.dot(w1_ref[i], a, preferred_element_type=jnp.float32) + b1_ref[i]
        h = _elu(o + h)                             # conv1 + residual + ELU

    o_ref[0] = h                                    # one (ch, l_up) slab store


# ------------------- one-time (load-time) weight packing -------------------- #
def pack_decoder_params(ct_w, ct_b, w0_stack, b0_stack, w1_stack, b1_stack,
                        stride=STRIDE, l_in=L_IN):
    """Host-side, called ONCE; nothing here runs on the per-forward hot path.

    The time-scatter matrices depend only on (stride, l_in); recompute if the
    deployment sequence length changes.
    """
    ct_w = np.asarray(ct_w, np.float32)             # (C, ch, 2s)
    ct_b = np.asarray(ct_b, np.float32)             # (ch,)
    w0 = np.asarray(w0_stack, np.float32)           # (3, ch, ch, K)
    b0 = np.asarray(b0_stack, np.float32)           # (3, ch)
    w1 = np.asarray(w1_stack, np.float32)           # (3, ch, ch, 1)
    b1 = np.asarray(b1_stack, np.float32)           # (3, ch)

    C, ch, k2 = ct_w.shape
    s = stride
    l_up = (l_in - 1) * s

    # Per-tap transposed ConvTranspose1d weights: w_up[k] = ct_w[:, :, k]^T.
    w_up = np.stack([ct_w[:, :, k].T for k in range(k2)])               # (2s, ch, C)
    # 0/1 time-scatter matrices: s_up[k, j, t] = 1  iff  t == j*s - s + k.
    s_up = np.zeros((k2, l_in, l_up), np.float32)
    for k in range(k2):
        for j in range(l_in):
            t = j * s - s + k
            if 0 <= t < l_up:
                s_up[k, j, t] = 1.0
    b_up = ct_b.reshape(ch, 1)

    w_r0 = np.transpose(w0, (0, 3, 1, 2))                               # (3, K, ch, ch)
    b_r0 = b0.reshape(-1, ch, 1)
    w_r1 = w1[:, :, :, 0]                                               # (3, ch, ch)
    b_r1 = b1.reshape(-1, ch, 1)

    return tuple(jnp.asarray(a) for a in (w_up, s_up, b_up, w_r0, b_r0, w_r1, b_r1))


# -------------------------------- wrapper ----------------------------------- #
def _resident_spec(shape):
    zeros = (0,) * len(shape)
    return pl.BlockSpec(shape, lambda b: zeros)


@jax.jit
def decoder_block_forward(x, w_up, s_up, b_up, w_r0, b_r0, w_r1, b_r1):
    # The jitted forward is exactly one pallas_call: no per-call layout or
    # weight-packing HLOs.
    B, C, L_in = x.shape
    ch = C // 2
    l_up = (L_in - 1) * STRIDE

    return pl.pallas_call(
        decoder_kernel,
        out_shape=jax.ShapeDtypeStruct((B, ch, l_up), jnp.float32),
        grid=(B,),
        in_specs=[
            pl.BlockSpec((1, C, L_in), lambda b: (b, 0, 0)),
            _resident_spec(w_up.shape),
            _resident_spec(s_up.shape),
            _resident_spec(b_up.shape),
            _resident_spec(w_r0.shape),
            _resident_spec(b_r0.shape),
            _resident_spec(w_r1.shape),
            _resident_spec(b_r1.shape),
        ],
        out_specs=pl.BlockSpec((1, ch, l_up), lambda b: (b, 0, 0)),
        scratch_shapes=[pltpu.VMEM((ch, PAD_W), jnp.float32)],
        compiler_params=pltpu.CompilerParams(
            dimension_semantics=("parallel",)),
    )(x, w_up, s_up, b_up, w_r0, b_r0, w_r1, b_r1)


# --------------------------- numpy reference -------------------------------- #
def _elu_np(x):
    return np.where(x > 0, x, np.expm1(x))


def ref_decoder_block(x, ct_w, ct_b, res_params, s):
    B, C, L = x.shape
    ch = C // 2
    l_out = (L - 1) * s
    p = s
    y = np.zeros((B, ch, l_out), np.float64)
    for b in range(B):
        for co in range(ch):
            for j in range(L):
                for k in range(2 * s):
                    t = j * s - p + k
                    if 0 <= t < l_out:
                        y[b, co, t] += float(np.dot(x[b, :, j], ct_w[:, co, k]))
            y[b, co, :] += ct_b[co]
    h = _elu_np(y)
    for (w0, b0, w1, b1, d) in res_params:
        pad = (KSIZE // 2) * d
        hp = np.pad(h, ((0, 0), (0, 0), (pad, pad)))
        out0 = np.zeros_like(h)
        for b in range(B):
            for co in range(ch):
                for t in range(l_out):
                    acc = b0[co]
                    for ci in range(ch):
                        for k in range(KSIZE):
                            acc += hp[b, ci, t + k * d] * w0[co, ci, k]
                    out0[b, co, t] = acc
        a = _elu_np(out0)
        out1 = np.einsum("oc,bct->bot", w1[:, :, 0], a) + b1[None, :, None]
        h = _elu_np(out1 + h)
    return h


# ---------------------------------- main ------------------------------------ #
if __name__ == "__main__":
    key = jax.random.PRNGKey(0)
    keys = jax.random.split(key, 16)

    # ConvTranspose1d params: weight (C_in, C_out, 2*stride), bias (C_out,)
    ct_w = 0.2 * jax.random.normal(keys[0], (N_CHANNELS, CH, 2 * STRIDE), jnp.float32)
    ct_b = 0.2 * jax.random.normal(keys[1], (CH,), jnp.float32)

    # ResNet1d params (3 blocks): conv0 (CH, CH, 7), conv1 (CH, CH, 1)
    res = []
    for i in range(3):
        res.append(dict(
            w0=0.2 * jax.random.normal(keys[2 + 4 * i], (CH, CH, KSIZE), jnp.float32),
            b0=0.2 * jax.random.normal(keys[3 + 4 * i], (CH,), jnp.float32),
            w1=0.2 * jax.random.normal(keys[4 + 4 * i], (CH, CH, 1), jnp.float32),
            b1=0.2 * jax.random.normal(keys[5 + 4 * i], (CH,), jnp.float32),
        ))
    w0_stack = jnp.stack([r["w0"] for r in res])          # (3, CH, CH, 7)
    b0_stack = jnp.stack([r["b0"] for r in res])          # (3, CH)
    w1_stack = jnp.stack([r["w1"] for r in res])          # (3, CH, CH, 1)
    b1_stack = jnp.stack([r["b1"] for r in res])          # (3, CH)

    # Input in PyTorch NCL layout.
    x = jax.random.normal(keys[14], (BATCH, N_CHANNELS, L_IN), jnp.float32)

    # One-time weight packing (outside the per-forward path).
    packed = pack_decoder_params(ct_w, ct_b, w0_stack, b0_stack, w1_stack, b1_stack)

    out = decoder_block_forward(x, *packed)
    out = jax.block_until_ready(out)

    # Sanity-check against a plain numpy reference of the PyTorch semantics.
    ref = ref_decoder_block(
        np.asarray(x, np.float64), np.asarray(ct_w, np.float64),
        np.asarray(ct_b, np.float64),
        [(np.asarray(r["w0"], np.float64), np.asarray(r["b0"], np.float64),
          np.asarray(r["w1"], np.float64), np.asarray(r["b1"], np.float64), d)
         for r, d in zip(res, DILATIONS)],
        STRIDE,
    )
    np.testing.assert_allclose(np.asarray(out), ref, rtol=2e-2, atol=2e-2)

    print("KERNEL_OK")
</pallas_src>

<mosaic_0001>
module attributes {stable_mosaic.version = 11 : i64} {
  func.func @decoder_kernel(%arg0: i32, %arg1: memref<1x8x16xf32, #tpu.memory_space<vmem>>, %arg2: memref<4x4x8xf32, #tpu.memory_space<vmem>>, %arg3: memref<4x16x30xf32, #tpu.memory_space<vmem>>, %arg4: memref<4x1xf32, #tpu.memory_space<vmem>>, %arg5: memref<3x7x4x4xf32, #tpu.memory_space<vmem>>, %arg6: memref<3x4x1xf32, #tpu.memory_space<vmem>>, %arg7: memref<3x4x4xf32, #tpu.memory_space<vmem>>, %arg8: memref<3x4x1xf32, #tpu.memory_space<vmem>>, %arg9: memref<1x4x30xf32, #tpu.memory_space<vmem>>, %arg10: memref<4x128xf32, #tpu.memory_space<vmem>>) attributes {dimension_semantics = [#tpu.dimension_semantics<parallel>], iteration_bounds = array<i64: 2>, scalar_prefetch = 0 : i64, scratch_operands = 1 : i64, tpu.core_type = #tpu.core_type<tc>, window_params = [{transform_indices = @transform_0, window_bounds = array<i64: 1, 8, 16>}, {pipeline_mode = #tpu.pipeline_mode<synchronous>, transform_indices = @transform_1, window_bounds = array<i64: 4, 4, 8>}, {pipeline_mode = #tpu.pipeline_mode<synchronous>, transform_indices = @transform_2, window_bounds = array<i64: 4, 16, 30>}, {pipeline_mode = #tpu.pipeline_mode<synchronous>, transform_indices = @transform_3, window_bounds = array<i64: 4, 1>}, {pipeline_mode = #tpu.pipeline_mode<synchronous>, transform_indices = @transform_4, window_bounds = array<i64: 3, 7, 4, 4>}, {pipeline_mode = #tpu.pipeline_mode<synchronous>, transform_indices = @transform_5, window_bounds = array<i64: 3, 4, 1>}, {pipeline_mode = #tpu.pipeline_mode<synchronous>, transform_indices = @transform_6, window_bounds = array<i64: 3, 4, 4>}, {pipeline_mode = #tpu.pipeline_mode<synchronous>, transform_indices = @transform_7, window_bounds = array<i64: 3, 4, 1>}, {transform_indices = @transform_8, window_bounds = array<i64: 1, 4, 30>}]} {
    %cst = arith.constant 0.000000e+00 : f32
    %0 = vector.broadcast %cst : f32 to vector<4x128xf32>
    %c0 = arith.constant 0 : index
    %c0_0 = arith.constant 0 : index
    %1 = vector.load %arg10[%c0, %c0_0] : memref<4x128xf32, #tpu.memory_space<vmem>>, vector<4x128xf32>
    tpu.vector_store %arg10[%c0, %c0_0], %0 {strides = array<i32>} : memref<4x128xf32, #tpu.memory_space<vmem>>, vector<4x128xf32>,
    %c0_1 = arith.constant 0 : index
    %c0_2 = arith.constant 0 : index
    %c0_3 = arith.constant 0 : index
    %2 = vector.load %arg1[%c0_1, %c0_2, %c0_3] : memref<1x8x16xf32, #tpu.memory_space<vmem>>, vector<1x8x16xf32>
    %3 = vector.shape_cast %2 : vector<1x8x16xf32> to vector<8x16xf32>
    %cst_4 = arith.constant 0.000000e+00 : f32
    %4 = vector.broadcast %cst_4 : f32 to vector<4x30xf32>
    %c0_5 = arith.constant 0 : index
    %c0_6 = arith.constant 0 : index
    %c0_7 = arith.constant 0 : index
    %5 = vector.load %arg3[%c0_5, %c0_6, %c0_7] : memref<4x16x30xf32, #tpu.memory_space<vmem>>, vector<1x16x30xf32>
    %6 = vector.shape_cast %5 : vector<1x16x30xf32> to vector<16x30xf32>
    %cst_8 = arith.constant dense<0.000000e+00> : vector<8x30xf32>
    %7 = tpu.matmul %3, %6, %cst_8 {dimension_numbers = #tpu.dot_dimension_numbers<[1], [0], [0], [1], [0, 0, 1, 1], [], []>} : vector<8x16xf32>, vector<16x30xf32>, vector<8x30xf32> -> vector<8x30xf32>
    %c0_9 = arith.constant 0 : index
    %c0_10 = arith.constant 0 : index
    %c0_11 = arith.constant 0 : index
    %8 = vector.load %arg2[%c0_9, %c0_10, %c0_11] : memref<4x4x8xf32, #tpu.memory_space<vmem>>, vector<1x4x8xf32>
    %9 = vector.shape_cast %8 : vector<1x4x8xf32> to vector<4x8xf32>
    %cst_12 = arith.constant dense<0.000000e+00> : vector<4x30xf32>
    %10 = tpu.matmul %9, %7, %cst_12 {dimension_numbers = #tpu.dot_dimension_numbers<[1], [0], [0], [1], [0, 0, 1, 1], [], []>} : vector<4x8xf32>, vector<8x30xf32>, vector<4x30xf32> -> vector<4x30xf32>
    %11 = arith.addf %4, %10 : vector<4x30xf32>
    %c1 = arith.constant 1 : index
    %c0_13 = arith.constant 0 : index
    %c0_14 = arith.constant 0 : index
    %12 = vector.load %arg3[%c1, %c0_13, %c0_14] : memref<4x16x30xf32, #tpu.memory_space<vmem>>, vector<1x16x30xf32>
    %13 = vector.shape_cast %12 : vector<1x16x30xf32> to vector<16x30xf32>
    %cst_15 = arith.constant dense<0.000000e+00> : vector<8x30xf32>
    %14 = tpu.matmul %3, %13, %cst_15 {dimension_numbers = #tpu.dot_dimension_numbers<[1], [0], [0], [1], [0, 0, 1, 1], [], []>} : vector<8x16xf32>, vector<16x30xf32>, vector<8x30xf32> -> vector<8x30xf32>
    %c1_16 = arith.constant 1 : index
    %c0_17 = arith.constant 0 : index
    %c0_18 = arith.constant 0 : index
    %15 = vector.load %arg2[%c1_16, %c0_17, %c0_18] : memref<4x4x8xf32, #tpu.memory_space<vmem>>, vector<1x4x8xf32>
    %16 = vector.shape_cast %15 : vector<1x4x8xf32> to vector<4x8xf32>
    %cst_19 = arith.constant dense<0.000000e+00> : vector<4x30xf32>
    %17 = tpu.matmul %16, %14, %cst_19 {dimension_numbers = #tpu.dot_dimension_numbers<[1], [0], [0], [1], [0, 0, 1, 1], [], []>} : vector<4x8xf32>, vector<8x30xf32>, vector<4x30xf32> -> vector<4x30xf32>
    %18 = arith.addf %11, %17 : vector<4x30xf32>
    %c2 = arith.constant 2 : index
    %c0_20 = arith.constant 0 : index
    %c0_21 = arith.constant 0 : index
    %19 = vector.load %arg3[%c2, %c0_20, %c0_21] : memref<4x16x30xf32, #tpu.memory_space<vmem>>, vector<1x16x30xf32>
    %20 = vector.shape_cast %19 : vector<1x16x30xf32> to vector<16x30xf32>
    %cst_22 = arith.constant dense<0.000000e+00> : vector<8x30xf32>
    %21 = tpu.matmul %3, %20, %cst_22 {dimension_numbers = #tpu.dot_dimension_numbers<[1], [0], [0], [1], [0, 0, 1, 1], [], []>} : vector<8x16xf32>, vector<16x30xf32>, vector<8x30xf32> -> vector<8x30xf32>
    %c2_23 = arith.constant 2 : index
    %c0_24 = arith.constant 0 : index
    %c0_25 = arith.constant 0 : index
    %22 = vector.load %arg2[%c2_23, %c0_24, %c0_25] : memref<4x4x8xf32, #tpu.memory_space<vmem>>, vector<1x4x8xf32>
    %23 = vector.shape_cast %22 : vector<1x4x8xf32> to vector<4x8xf32>
    %cst_26 = arith.constant dense<0.000000e+00> : vector<4x30xf32>
    %24 = tpu.matmul %23, %21, %cst_26 {dimension_numbers = #tpu.dot_dimension_numbers<[1], [0], [0], [1], [0, 0, 1, 1], [], []>} : vector<4x8xf32>, vector<8x30xf32>, vector<4x30xf32> -> vector<4x30xf32>
    %25 = arith.addf %18, %24 : vector<4x30xf32>
    %c3 = arith.constant 3 : index
    %c0_27 = arith.constant 0 : index
    %c0_28 = arith.constant 0 : index
    %26 = vector.load %arg3[%c3, %c0_27, %c0_28] : memref<4x16x30xf32, #tpu.memory_space<vmem>>, vector<1x16x30xf32>
    %27 = vector.shape_cast %26 : vector<1x16x30xf32> to vector<16x30xf32>
    %cst_29 = arith.constant dense<0.000000e+00> : vector<8x30xf32>
    %28 = tpu.matmul %3, %27, %cst_29 {dimension_numbers = #tpu.dot_dimension_numbers<[1], [0], [0], [1], [0, 0, 1, 1], [], []>} : vector<8x16xf32>, vector<16x30xf32>, vector<8x30xf32> -> vector<8x30xf32>
    %c3_30 = arith.constant 3 : index
    %c0_31 = arith.constant 0 : index
    %c0_32 = arith.constant 0 : index
    %29 = vector.load %arg2[%c3_30, %c0_31, %c0_32] : memref<4x4x8xf32, #tpu.memory_space<vmem>>, vector<1x4x8xf32>
    %30 = vector.shape_cast %29 : vector<1x4x8xf32> to vector<4x8xf32>
    %cst_33 = arith.constant dense<0.000000e+00> : vector<4x30xf32>
    %31 = tpu.matmul %30, %28, %cst_33 {dimension_numbers = #tpu.dot_dimension_numbers<[1], [0], [0], [1], [0, 0, 1, 1], [], []>} : vector<4x8xf32>, vector<8x30xf32>, vector<4x30xf32> -> vector<4x30xf32>
    %32 = arith.addf %25, %31 : vector<4x30xf32>
    %c0_34 = arith.constant 0 : index
    %c0_35 = arith.constant 0 : index
    %33 = vector.load %arg4[%c0_34, %c0_35] : memref<4x1xf32, #tpu.memory_space<vmem>>, vector<4x1xf32>
    %34 = vector.broadcast %33 : vector<4x1xf32> to vector<4x30xf32>
    %35 = arith.addf %32, %34 : vector<4x30xf32>
    %cst_36 = arith.constant 0.000000e+00 : f32
    %36 = vector.broadcast %cst_36 : f32 to vector<4x30xf32>
    %37 = arith.cmpf ogt, %35, %36 : vector<4x30xf32>
    %cst_37 = arith.constant 0.000000e+00 : f32
    %38 = vector.broadcast %cst_37 : f32 to vector<4x30xf32>
    %39 = arith.minimumf %35, %38 : vector<4x30xf32>
    %40 = math.exp %39 : vector<4x30xf32>
    %cst_38 = arith.constant 1.000000e+00 : f32
    %41 = vector.broadcast %cst_38 : f32 to vector<4x30xf32>
    %42 = arith.subf %40, %41 : vector<4x30xf32>
    %43 = arith.select %37, %35, %42 : vector<4x30xi1>, vector<4x30xf32>
    %c0_39 = arith.constant 0 : index
    %c32 = arith.constant 32 : index
    %44 = vector.load %arg10[%c0_39, %c32] : memref<4x128xf32, #tpu.memory_space<vmem>>, vector<4x30xf32>
    tpu.vector_store %arg10[%c0_39, %c32], %43 {strides = array<i32>} : memref<4x128xf32, #tpu.memory_space<vmem>>, vector<4x30xf32>,
    %c0_40 = arith.constant 0 : index
    %c0_41 = arith.constant 0 : index
    %45 = vector.load %arg10[%c0_40, %c0_41] : memref<4x128xf32, #tpu.memory_space<vmem>>, vector<4x128xf32>
    %cst_42 = arith.constant 0.000000e+00 : f32
    %46 = vector.broadcast %cst_42 : f32 to vector<4x30xf32>
    %47 = vector.extract_strided_slice %45 {offsets = [0, 29], sizes = [4, 30], strides = [1, 1]} : vector<4x128xf32> to vector<4x30xf32>
    %c0_43 = arith.constant 0 : index
    %c0_44 = arith.constant 0 : index
    %c0_45 = arith.constant 0 : index
    %c0_46 = arith.constant 0 : index
    %48 = vector.load %arg5[%c0_43, %c0_44, %c0_45, %c0_46] : memref<3x7x4x4xf32, #tpu.memory_space<vmem>>, vector<1x1x4x4xf32>
    %49 = vector.shape_cast %48 : vector<1x1x4x4xf32> to vector<4x4xf32>
    %cst_47 = arith.constant dense<0.000000e+00> : vector<4x30xf32>
    %50 = tpu.matmul %49, %47, %cst_47 {dimension_numbers = #tpu.dot_dimension_numbers<[1], [0], [0], [1], [0, 0, 1, 1], [], []>} : vector<4x4xf32>, vector<4x30xf32>, vector<4x30xf32> -> vector<4x30xf32>
    %51 = arith.addf %46, %50 : vector<4x30xf32>
    %52 = vector.extract_strided_slice %45 {offsets = [0, 30], sizes = [4, 30], strides = [1, 1]} : vector<4x128xf32> to vector<4x30xf32>
    %c0_48 = arith.constant 0 : index
    %c1_49 = arith.constant 1 : index
    %c0_50 = arith.constant 0 : index
    %c0_51 = arith.constant 0 : index
    %53 = vector.load %arg5[%c0_48, %c1_49, %c0_50, %c0_51] : memref<3x7x4x4xf32, #tpu.memory_space<vmem>>, vector<1x1x4x4xf32>
    %54 = vector.shape_cast %53 : vector<1x1x4x4xf32> to vector<4x4xf32>
    %cst_52 = arith.constant dense<0.000000e+00> : vector<4x30xf32>
    %55 = tpu.matmul %54, %52, %cst_52 {dimension_numbers = #tpu.dot_dimension_numbers<[1], [0], [0], [1], [0, 0, 1, 1], [], []>} : vector<4x4xf32>, vector<4x30xf32>, vector<4x30xf32> -> vector<4x30xf32>
    %56 = arith.addf %51, %55 : vector<4x30xf32>
    %57 = vector.extract_strided_slice %45 {offsets = [0, 31], sizes = [4, 30], strides = [1, 1]} : vector<4x128xf32> to vector<4x30xf32>
    %c0_53 = arith.constant 0 : index
    %c2_54 = arith.constant 2 : index
    %c0_55 = arith.constant 0 : index
    %c0_56 = arith.constant 0 : index
    %58 = vector.load %arg5[%c0_53, %c2_54, %c0_55, %c0_56] : memref<3x7x4x4xf32, #tpu.memory_space<vmem>>, vector<1x1x4x4xf32>
    %59 = vector.shape_cast %58 : vector<1x1x4x4xf32> to vector<4x4xf32>
    %cst_57 = arith.constant dense<0.000000e+00> : vector<4x30xf32>
    %60 = tpu.matmul %59, %57, %cst_57 {dimension_numbers = #tpu.dot_dimension_numbers<[1], [0], [0], [1], [0, 0, 1, 1], [], []>} : vector<4x4xf32>, vector<4x30xf32>, vector<4x30xf32> -> vector<4x30xf32>
    %61 = arith.addf %56, %60 : vector<4x30xf32>
    %62 = vector.extract_strided_slice %45 {offsets = [0, 32], sizes = [4, 30], strides = [1, 1]} : vector<4x128xf32> to vector<4x30xf32>
    %c0_58 = arith.constant 0 : index
    %c3_59 = arith.constant 3 : index
    %c0_60 = arith.constant 0 : index
    %c0_61 = arith.constant 0 : index
    %63 = vector.load %arg5[%c0_58, %c3_59, %c0_60, %c0_61] : memref<3x7x4x4xf32, #tpu.memory_space<vmem>>, vector<1x1x4x4xf32>
    %64 = vector.shape_cast %63 : vector<1x1x4x4xf32> to vector<4x4xf32>
    %cst_62 = arith.constant dense<0.000000e+00> : vector<4x30xf32>
    %65 = tpu.matmul %64, %62, %cst_62 {dimension_numbers = #tpu.dot_dimension_numbers<[1], [0], [0], [1], [0, 0, 1, 1], [], []>} : vector<4x4xf32>, vector<4x30xf32>, vector<4x30xf32> -> vector<4x30xf32>
    %66 = arith.addf %61, %65 : vector<4x30xf32>
    %67 = vector.extract_strided_slice %45 {offsets = [0, 33], sizes = [4, 30], strides = [1, 1]} : vector<4x128xf32> to vector<4x30xf32>
    %c0_63 = arith.constant 0 : index
    %c4 = arith.constant 4 : index
    %c0_64 = arith.constant 0 : index
    %c0_65 = arith.constant 0 : index
    %68 = vector.load %arg5[%c0_63, %c4, %c0_64, %c0_65] : memref<3x7x4x4xf32, #tpu.memory_space<vmem>>, vector<1x1x4x4xf32>
    %69 = vector.shape_cast %68 : vector<1x1x4x4xf32> to vector<4x4xf32>
    %cst_66 = arith.constant dense<0.000000e+00> : vector<4x30xf32>
    %70 = tpu.matmul %69, %67, %cst_66 {dimension_numbers = #tpu.dot_dimension_numbers<[1], [0], [0], [1], [0, 0, 1, 1], [], []>} : vector<4x4xf32>, vector<4x30xf32>, vector<4x30xf32> -> vector<4x30xf32>
    %71 = arith.addf %66, %70 : vector<4x30xf32>
    %72 = vector.extract_strided_slice %45 {offsets = [0, 34], sizes = [4, 30], strides = [1, 1]} : vector<4x128xf32> to vector<4x30xf32>
    %c0_67 = arith.constant 0 : index
    %c5 = arith.constant 5 : index
    %c0_68 = arith.constant 0 : index
    %c0_69 = arith.constant 0 : index
    %73 = vector.load %arg5[%c0_67, %c5, %c0_68, %c0_69] : memref<3x7x4x4xf32, #tpu.memory_space<vmem>>, vector<1x1x4x4xf32>
    %74 = vector.shape_cast %73 : vector<1x1x4x4xf32> to vector<4x4xf32>
    %cst_70 = arith.constant dense<0.000000e+00> : vector<4x30xf32>
    %75 = tpu.matmul %74, %72, %cst_70 {dimension_numbers = #tpu.dot_dimension_numbers<[1], [0], [0], [1], [0, 0, 1, 1], [], []>} : vector<4x4xf32>, vector<4x30xf32>, vector<4x30xf32> -> vector<4x30xf32>
    %76 = arith.addf %71, %75 : vector<4x30xf32>
    %77 = vector.extract_strided_slice %45 {offsets = [0, 35], sizes = [4, 30], strides = [1, 1]} : vector<4x128xf32> to vector<4x30xf32>
    %c0_71 = arith.constant 0 : index
    %c6 = arith.constant 6 : index
    %c0_72 = arith.constant 0 : index
    %c0_73 = arith.constant 0 : index
    %78 = vector.load %arg5[%c0_71, %c6, %c0_72, %c0_73] : memref<3x7x4x4xf32, #tpu.memory_space<vmem>>, vector<1x1x4x4xf32>
    %79 = vector.shape_cast %78 : vector<1x1x4x4xf32> to vector<4x4xf32>
    %cst_74 = arith.constant dense<0.000000e+00> : vector<4x30xf32>
    %80 = tpu.matmul %79, %77, %cst_74 {dimension_numbers = #tpu.dot_dimension_numbers<[1], [0], [0], [1], [0, 0, 1, 1], [], []>} : vector<4x4xf32>, vector<4x30xf32>, vector<4x30xf32> -> vector<4x30xf32>
    %81 = arith.addf %76, %80 : vector<4x30xf32>
    %c0_75 = arith.constant 0 : index
    %c0_76 = arith.constant 0 : index
    %c0_77 = arith.constant 0 : index
    %82 = vector.load %arg6[%c0_75, %c0_76, %c0_77] : memref<3x4x1xf32, #tpu.memory_space<vmem>>, vector<1x4x1xf32>
    %83 = vector.shape_cast %82 : vector<1x4x1xf32> to vector<4x1xf32>
    %84 = vector.broadcast %83 : vector<4x1xf32> to vector<4x30xf32>
    %85 = arith.addf %81, %84 : vector<4x30xf32>
    %cst_78 = arith.constant 0.000000e+00 : f32
    %86 = vector.broadcast %cst_78 : f32 to vector<4x30xf32>
    %87 = arith.cmpf ogt, %85, %86 : vector<4x30xf32>
    %cst_79 = arith.constant 0.000000e+00 : f32
    %88 = vector.broadcast %cst_79 : f32 to vector<4x30xf32>
    %89 = arith.minimumf %85, %88 : vector<4x30xf32>
    %90 = math.exp %89 : vector<4x30xf32>
    %cst_80 = arith.constant 1.000000e+00 : f32
    %91 = vector.broadcast %cst_80 : f32 to vector<4x30xf32>
    %92 = arith.subf %90, %91 : vector<4x30xf32>
    %93 = arith.select %87, %85, %92 : vector<4x30xi1>, vector<4x30xf32>
    %c0_81 = arith.constant 0 : index
    %c0_82 = arith.constant 0 : index
    %c0_83 = arith.constant 0 : index
    %94 = vector.load %arg7[%c0_81, %c0_82, %c0_83] : memref<3x4x4xf32, #tpu.memory_space<vmem>>, vector<1x4x4xf32>
    %95 = vector.shape_cast %94 : vector<1x4x4xf32> to vector<4x4xf32>
    %cst_84 = arith.constant dense<0.000000e+00> : vector<4x30xf32>
    %96 = tpu.matmul %95, %93, %cst_84 {dimension_numbers = #tpu.dot_dimension_numbers<[1], [0], [0], [1], [0, 0, 1, 1], [], []>} : vector<4x4xf32>, vector<4x30xf32>, vector<4x30xf32> -> vector<4x30xf32>
    %c0_85 = arith.constant 0 : index
    %c0_86 = arith.constant 0 : index
    %c0_87 = arith.constant 0 : index
    %97 = vector.load %arg8[%c0_85, %c0_86, %c0_87] : memref<3x4x1xf32, #tpu.memory_space<vmem>>, vector<1x4x1xf32>
    %98 = vector.shape_cast %97 : vector<1x4x1xf32> to vector<4x1xf32>
    %99 = vector.broadcast %98 : vector<4x1xf32> to vector<4x30xf32>
    %100 = arith.addf %96, %99 : vector<4x30xf32>
    %101 = arith.addf %100, %43 : vector<4x30xf32>
    %cst_88 = arith.constant 0.000000e+00 : f32
    %102 = vector.broadcast %cst_88 : f32 to vector<4x30xf32>
    %103 = arith.cmpf ogt, %101, %102 : vector<4x30xf32>
    %cst_89 = arith.constant 0.000000e+00 : f32
    %104 = vector.broadcast %cst_89 : f32 to vector<4x30xf32>
    %105 = arith.minimumf %101, %104 : vector<4x30xf32>
    %106 = math.exp %105 : vector<4x30xf32>
    %cst_90 = arith.constant 1.000000e+00 : f32
    %107 = vector.broadcast %cst_90 : f32 to vector<4x30xf32>
    %108 = arith.subf %106, %107 : vector<4x30xf32>
    %109 = arith.select %103, %101, %108 : vector<4x30xi1>, vector<4x30xf32>
    %c0_91 = arith.constant 0 : index
    %c32_92 = arith.constant 32 : index
    %110 = vector.load %arg10[%c0_91, %c32_92] : memref<4x128xf32, #tpu.memory_space<vmem>>, vector<4x30xf32>
    tpu.vector_store %arg10[%c0_91, %c32_92], %109 {strides = array<i32>} : memref<4x128xf32, #tpu.memory_space<vmem>>, vector<4x30xf32>,
    %c0_93 = arith.constant 0 : index
    %c0_94 = arith.constant 0 : index
    %111 = vector.load %arg10[%c0_93, %c0_94] : memref<4x128xf32, #tpu.memory_space<vmem>>, vector<4x128xf32>
    %cst_95 = arith.constant 0.000000e+00 : f32
    %112 = vector.broadcast %cst_95 : f32 to vector<4x30xf32>
    %113 = vector.extract_strided_slice %111 {offsets = [0, 23], sizes = [4, 30], strides = [1, 1]} : vector<4x128xf32> to vector<4x30xf32>
    %c1_96 = arith.constant 1 : index
    %c0_97 = arith.constant 0 : index
    %c0_98 = arith.constant 0 : index
    %c0_99 = arith.constant 0 : index
    %114 = vector.load %arg5[%c1_96, %c0_97, %c0_98, %c0_99] : memref<3x7x4x4xf32, #tpu.memory_space<vmem>>, vector<1x1x4x4xf32>
    %115 = vector.shape_cast %114 : vector<1x1x4x4xf32> to vector<4x4xf32>
    %cst_100 = arith.constant dense<0.000000e+00> : vector<4x30xf32>
    %116 = tpu.matmul %115, %113, %cst_100 {dimension_numbers = #tpu.dot_dimension_numbers<[1], [0], [0], [1], [0, 0, 1, 1], [], []>} : vector<4x4xf32>, vector<4x30xf32>, vector<4x30xf32> -> vector<4x30xf32>
    %117 = arith.addf %112, %116 : vector<4x30xf32>
    %118 = vector.extract_strided_slice %111 {offsets = [0, 26], sizes = [4, 30], strides = [1, 1]} : vector<4x128xf32> to vector<4x30xf32>
    %c1_101 = arith.constant 1 : index
    %c1_102 = arith.constant 1 : index
    %c0_103 = arith.constant 0 : index
    %c0_104 = arith.constant 0 : index
    %119 = vector.load %arg5[%c1_101, %c1_102, %c0_103, %c0_104] : memref<3x7x4x4xf32, #tpu.memory_space<vmem>>, vector<1x1x4x4xf32>
    %120 = vector.shape_cast %119 : vector<1x1x4x4xf32> to vector<4x4xf32>
    %cst_105 = arith.constant dense<0.000000e+00> : vector<4x30xf32>
    %121 = tpu.matmul %120, %118, %cst_105 {dimension_numbers = #tpu.dot_dimension_numbers<[1], [0], [0], [1], [0, 0, 1, 1], [], []>} : vector<4x4xf32>, vector<4x30xf32>, vector<4x30xf32> -> vector<4x30xf32>
    %122 = arith.addf %117, %121 : vector<4x30xf32>
    %123 = vector.extract_strided_slice %111 {offsets = [0, 29], sizes = [4, 30], strides = [1, 1]} : vector<4x128xf32> to vector<4x30xf32>
    %c1_106 = arith.constant 1 : index
    %c2_107 = arith.constant 2 : index
    %c0_108 = arith.constant 0 : index
    %c0_109 = arith.constant 0 : index
    %124 = vector.load %arg5[%c1_106, %c2_107, %c0_108, %c0_109] : memref<3x7x4x4xf32, #tpu.memory_space<vmem>>, vector<1x1x4x4xf32>
    %125 = vector.shape_cast %124 : vector<1x1x4x4xf32> to vector<4x4xf32>
    %cst_110 = arith.constant dense<0.000000e+00> : vector<4x30xf32>
    %126 = tpu.matmul %125, %123, %cst_110 {dimension_numbers = #tpu.dot_dimension_numbers<[1], [0], [0], [1], [0, 0, 1, 1], [], []>} : vector<4x4xf32>, vector<4x30xf32>, vector<4x30xf32> -> vector<4x30xf32>
    %127 = arith.addf %122, %126 : vector<4x30xf32>
    %128 = vector.extract_strided_slice %111 {offsets = [0, 32], sizes = [4, 30], strides = [1, 1]} : vector<4x128xf32> to vector<4x30xf32>
    %c1_111 = arith.constant 1 : index
    %c3_112 = arith.constant 3 : index
    %c0_113 = arith.constant 0 : index
    %c0_114 = arith.constant 0 : index
    %129 = vector.load %arg5[%c1_111, %c3_112, %c0_113, %c0_114] : memref<3x7x4x4xf32, #tpu.memory_space<vmem>>, vector<1x1x4x4xf32>
    %130 = vector.shape_cast %129 : vector<1x1x4x4xf32> to vector<4x4xf32>
    %cst_115 = arith.constant dense<0.000000e+00> : vector<4x30xf32>
    %131 = tpu.matmul %130, %128, %cst_115 {dimension_numbers = #tpu.dot_dimension_numbers<[1], [0], [0], [1], [0, 0, 1, 1], [], []>} : vector<4x4xf32>, vector<4x30xf32>, vector<4x30xf32> -> vector<4x30xf32>
    %132 = arith.addf %127, %131 : vector<4x30xf32>
    %133 = vector.extract_strided_slice %111 {offsets = [0, 35], sizes = [4, 30], strides = [1, 1]} : vector<4x128xf32> to vector<4x30xf32>
    %c1_116 = arith.constant 1 : index
    %c4_117 = arith.constant 4 : index
    %c0_118 = arith.constant 0 : index
    %c0_119 = arith.constant 0 : index
    %134 = vector.load %arg5[%c1_116, %c4_117, %c0_118, %c0_119] : memref<3x7x4x4xf32, #tpu.memory_space<vmem>>, vector<1x1x4x4xf32>
    %135 = vector.shape_cast %134 : vector<1x1x4x4xf32> to vector<4x4xf32>
    %cst_120 = arith.constant dense<0.000000e+00> : vector<4x30xf32>
    %136 = tpu.matmul %135, %133, %cst_120 {dimension_numbers = #tpu.dot_dimension_numbers<[1], [0], [0], [1], [0, 0, 1, 1], [], []>} : vector<4x4xf32>, vector<4x30xf32>, vector<4x30xf32> -> vector<4x30xf32>
    %137 = arith.addf %132, %136 : vector<4x30xf32>
    %138 = vector.extract_strided_slice %111 {offsets = [0, 38], sizes = [4, 30], strides = [1, 1]} : vector<4x128xf32> to vector<4x30xf32>
    %c1_121 = arith.constant 1 : index
    %c5_122 = arith.constant 5 : index
    %c0_123 = arith.constant 0 : index
    %c0_124 = arith.constant 0 : index
    %139 = vector.load %arg5[%c1_121, %c5_122, %c0_123, %c0_124] : memref<3x7x4x4xf32, #tpu.memory_space<vmem>>, vector<1x1x4x4xf32>
    %140 = vector.shape_cast %139 : vector<1x1x4x4xf32> to vector<4x4xf32>
    %cst_125 = arith.constant dense<0.000000e+00> : vector<4x30xf32>
    %141 = tpu.matmul %140, %138, %cst_125 {dimension_numbers = #tpu.dot_dimension_numbers<[1], [0], [0], [1], [0, 0, 1, 1], [], []>} : vector<4x4xf32>, vector<4x30xf32>, vector<4x30xf32> -> vector<4x30xf32>
    %142 = arith.addf %137, %141 : vector<4x30xf32>
    %143 = vector.extract_strided_slice %111 {offsets = [0, 41], sizes = [4, 30], strides = [1, 1]} : vector<4x128xf32> to vector<4x30xf32>
    %c1_126 = arith.constant 1 : index
    %c6_127 = arith.constant 6 : index
    %c0_128 = arith.constant 0 : index
    %c0_129 = arith.constant 0 : index
    %144 = vector.load %arg5[%c1_126, %c6_127, %c0_128, %c0_129] : memref<3x7x4x4xf32, #tpu.memory_space<vmem>>, vector<1x1x4x4xf32>
    %145 = vector.shape_cast %144 : vector<1x1x4x4xf32> to vector<4x4xf32>
    %cst_130 = arith.constant dense<0.000000e+00> : vector<4x30xf32>
    %146 = tpu.matmul %145, %143, %cst_130 {dimension_numbers = #tpu.dot_dimension_numbers<[1], [0], [0], [1], [0, 0, 1, 1], [], []>} : vector<4x4xf32>, vector<4x30xf32>, vector<4x30xf32> -> vector<4x30xf32>
    %147 = arith.addf %142, %146 : vector<4x30xf32>
    %c1_131 = arith.constant 1 : index
    %c0_132 = arith.constant 0 : index
    %c0_133 = arith.constant 0 : index
    %148 = vector.load %arg6[%c1_131, %c0_132, %c0_133] : memref<3x4x1xf32, #tpu.memory_space<vmem>>, vector<1x4x1xf32>
    %149 = vector.shape_cast %148 : vector<1x4x1xf32> to vector<4x1xf32>
    %150 = vector.broadcast %149 : vector<4x1xf32> to vector<4x30xf32>
    %151 = arith.addf %147, %150 : vector<4x30xf32>
    %cst_134 = arith.constant 0.000000e+00 : f32
    %152 = vector.broadcast %cst_134 : f32 to vector<4x30xf32>
    %153 = arith.cmpf ogt, %151, %152 : vector<4x30xf32>
    %cst_135 = arith.constant 0.000000e+00 : f32
    %154 = vector.broadcast %cst_135 : f32 to vector<4x30xf32>
    %155 = arith.minimumf %151, %154 : vector<4x30xf32>
    %156 = math.exp %155 : vector<4x30xf32>
    %cst_136 = arith.constant 1.000000e+00 : f32
    %157 = vector.broadcast %cst_136 : f32 to vector<4x30xf32>
    %158 = arith.subf %156, %157 : vector<4x30xf32>
    %159 = arith.select %153, %151, %158 : vector<4x30xi1>, vector<4x30xf32>
    %c1_137 = arith.constant 1 : index
    %c0_138 = arith.constant 0 : index
    %c0_139 = arith.constant 0 : index
    %160 = vector.load %arg7[%c1_137, %c0_138, %c0_139] : memref<3x4x4xf32, #tpu.memory_space<vmem>>, vector<1x4x4xf32>
    %161 = vector.shape_cast %160 : vector<1x4x4xf32> to vector<4x4xf32>
    %cst_140 = arith.constant dense<0.000000e+00> : vector<4x30xf32>
    %162 = tpu.matmul %161, %159, %cst_140 {dimension_numbers = #tpu.dot_dimension_numbers<[1], [0], [0], [1], [0, 0, 1, 1], [], []>} : vector<4x4xf32>, vector<4x30xf32>, vector<4x30xf32> -> vector<4x30xf32>
    %c1_141 = arith.constant 1 : index
    %c0_142 = arith.constant 0 : index
    %c0_143 = arith.constant 0 : index
    %163 = vector.load %arg8[%c1_141, %c0_142, %c0_143] : memref<3x4x1xf32, #tpu.memory_space<vmem>>, vector<1x4x1xf32>
    %164 = vector.shape_cast %163 : vector<1x4x1xf32> to vector<4x1xf32>
    %165 = vector.broadcast %164 : vector<4x1xf32> to vector<4x30xf32>
    %166 = arith.addf %162, %165 : vector<4x30xf32>
    %167 = arith.addf %166, %109 : vector<4x30xf32>
    %cst_144 = arith.constant 0.000000e+00 : f32
    %168 = vector.broadcast %cst_144 : f32 to vector<4x30xf32>
    %169 = arith.cmpf ogt, %167, %168 : vector<4x30xf32>
    %cst_145 = arith.constant 0.000000e+00 : f32
    %170 = vector.broadcast %cst_145 : f32 to vector<4x30xf32>
    %171 = arith.minimumf %167, %170 : vector<4x30xf32>
    %172 = math.exp %171 : vector<4x30xf32>
    %cst_146 = arith.constant 1.000000e+00 : f32
    %173 = vector.broadcast %cst_146 : f32 to vector<4x30xf32>
    %174 = arith.subf %172, %173 : vector<4x30xf32>
    %175 = arith.select %169, %167, %174 : vector<4x30xi1>, vector<4x30xf32>
    %c0_147 = arith.constant 0 : index
    %c32_148 = arith.constant 32 : index
    %176 = vector.load %arg10[%c0_147, %c32_148] : memref<4x128xf32, #tpu.memory_space<vmem>>, vector<4x30xf32>
    tpu.vector_store %arg10[%c0_147, %c32_148], %175 {strides = array<i32>} : memref<4x128xf32, #tpu.memory_space<vmem>>, vector<4x30xf32>,
    %c0_149 = arith.constant 0 : index
    %c0_150 = arith.constant 0 : index
    %177 = vector.load %arg10[%c0_149, %c0_150] : memref<4x128xf32, #tpu.memory_space<vmem>>, vector<4x128xf32>
    %cst_151 = arith.constant 0.000000e+00 : f32
    %178 = vector.broadcast %cst_151 : f32 to vector<4x30xf32>
    %179 = vector.extract_strided_slice %177 {offsets = [0, 5], sizes = [4, 30], strides = [1, 1]} : vector<4x128xf32> to vector<4x30xf32>
    %c2_152 = arith.constant 2 : index
    %c0_153 = arith.constant 0 : index
    %c0_154 = arith.constant 0 : index
    %c0_155 = arith.constant 0 : index
    %180 = vector.load %arg5[%c2_152, %c0_153, %c0_154, %c0_155] : memref<3x7x4x4xf32, #tpu.memory_space<vmem>>, vector<1x1x4x4xf32>
    %181 = vector.shape_cast %180 : vector<1x1x4x4xf32> to vector<4x4xf32>
    %cst_156 = arith.constant dense<0.000000e+00> : vector<4x30xf32>
    %182 = tpu.matmul %181, %179, %cst_156 {dimension_numbers = #tpu.dot_dimension_numbers<[1], [0], [0], [1], [0, 0, 1, 1], [], []>} : vector<4x4xf32>, vector<4x30xf32>, vector<4x30xf32> -> vector<4x30xf32>
    %183 = arith.addf %178, %182 : vector<4x30xf32>
    %184 = vector.extract_strided_slice %177 {offsets = [0, 14], sizes = [4, 30], strides = [1, 1]} : vector<4x128xf32> to vector<4x30xf32>
    %c2_157 = arith.constant 2 : index
    %c1_158 = arith.constant 1 : index
    %c0_159 = arith.constant 0 : index
    %c0_160 = arith.constant 0 : index
    %185 = vector.load %arg5[%c2_157, %c1_158, %c0_159, %c0_160] : memref<3x7x4x4xf32, #tpu.memory_space<vmem>>, vector<1x1x4x4xf32>
    %186 = vector.shape_cast %185 : vector<1x1x4x4xf32> to vector<4x4xf32>
    %cst_161 = arith.constant dense<0.000000e+00> : vector<4x30xf32>
    %187 = tpu.matmul %186, %184, %cst_161 {dimension_numbers = #tpu.dot_dimension_numbers<[1], [0], [0], [1], [0, 0, 1, 1], [], []>} : vector<4x4xf32>, vector<4x30xf32>, vector<4x30xf32> -> vector<4x30xf32>
    %188 = arith.addf %183, %187 : vector<4x30xf32>
    %189 = vector.extract_strided_slice %177 {offsets = [0, 23], sizes = [4, 30], strides = [1, 1]} : vector<4x128xf32> to vector<4x30xf32>
    %c2_162 = arith.constant 2 : index
    %c2_163 = arith.constant 2 : index
    %c0_164 = arith.constant 0 : index
    %c0_165 = arith.constant 0 : index
    %190 = vector.load %arg5[%c2_162, %c2_163, %c0_164, %c0_165] : memref<3x7x4x4xf32, #tpu.memory_space<vmem>>, vector<1x1x4x4xf32>
    %191 = vector.shape_cast %190 : vector<1x1x4x4xf32> to vector<4x4xf32>
    %cst_166 = arith.constant dense<0.000000e+00> : vector<4x30xf32>
    %192 = tpu.matmul %191, %189, %cst_166 {dimension_numbers = #tpu.dot_dimension_numbers<[1], [0], [0], [1], [0, 0, 1, 1], [], []>} : vector<4x4xf32>, vector<4x30xf32>, vector<4x30xf32> -> vector<4x30xf32>
    %193 = arith.addf %188, %192 : vector<4x30xf32>
    %194 = vector.extract_strided_slice %177 {offsets = [0, 32], sizes = [4, 30], strides = [1, 1]} : vector<4x128xf32> to vector<4x30xf32>
    %c2_167 = arith.constant 2 : index
    %c3_168 = arith.constant 3 : index
    %c0_169 = arith.constant 0 : index
    %c0_170 = arith.constant 0 : index
    %195 = vector.load %arg5[%c2_167, %c3_168, %c0_169, %c0_170] : memref<3x7x4x4xf32, #tpu.memory_space<vmem>>, vector<1x1x4x4xf32>
    %196 = vector.shape_cast %195 : vector<1x1x4x4xf32> to vector<4x4xf32>
    %cst_171 = arith.constant dense<0.000000e+00> : vector<4x30xf32>
    %197 = tpu.matmul %196, %194, %cst_171 {dimension_numbers = #tpu.dot_dimension_numbers<[1], [0], [0], [1], [0, 0, 1, 1], [], []>} : vector<4x4xf32>, vector<4x30xf32>, vector<4x30xf32> -> vector<4x30xf32>
    %198 = arith.addf %193, %197 : vector<4x30xf32>
    %199 = vector.extract_strided_slice %177 {offsets = [0, 41], sizes = [4, 30], strides = [1, 1]} : vector<4x128xf32> to vector<4x30xf32>
    %c2_172 = arith.constant 2 : index
    %c4_173 = arith.constant 4 : index
    %c0_174 = arith.constant 0 : index
    %c0_175 = arith.constant 0 : index
    %200 = vector.load %arg5[%c2_172, %c4_173, %c0_174, %c0_175] : memref<3x7x4x4xf32, #tpu.memory_space<vmem>>, vector<1x1x4x4xf32>
    %201 = vector.shape_cast %200 : vector<1x1x4x4xf32> to vector<4x4xf32>
    %cst_176 = arith.constant dense<0.000000e+00> : vector<4x30xf32>
    %202 = tpu.matmul %201, %199, %cst_176 {dimension_numbers = #tpu.dot_dimension_numbers<[1], [0], [0], [1], [0, 0, 1, 1], [], []>} : vector<4x4xf32>, vector<4x30xf32>, vector<4x30xf32> -> vector<4x30xf32>
    %203 = arith.addf %198, %202 : vector<4x30xf32>
    %204 = vector.extract_strided_slice %177 {offsets = [0, 50], sizes = [4, 30], strides = [1, 1]} : vector<4x128xf32> to vector<4x30xf32>
    %c2_177 = arith.constant 2 : index
    %c5_178 = arith.constant 5 : index
    %c0_179 = arith.constant 0 : index
    %c0_180 = arith.constant 0 : index
    %205 = vector.load %arg5[%c2_177, %c5_178, %c0_179, %c0_180] : memref<3x7x4x4xf32, #tpu.memory_space<vmem>>, vector<1x1x4x4xf32>
    %206 = vector.shape_cast %205 : vector<1x1x4x4xf32> to vector<4x4xf32>
    %cst_181 = arith.constant dense<0.000000e+00> : vector<4x30xf32>
    %207 = tpu.matmul %206, %204, %cst_181 {dimension_numbers = #tpu.dot_dimension_numbers<[1], [0], [0], [1], [0, 0, 1, 1], [], []>} : vector<4x4xf32>, vector<4x30xf32>, vector<4x30xf32> -> vector<4x30xf32>
    %208 = arith.addf %203, %207 : vector<4x30xf32>
    %209 = vector.extract_strided_slice %177 {offsets = [0, 59], sizes = [4, 30], strides = [1, 1]} : vector<4x128xf32> to vector<4x30xf32>
    %c2_182 = arith.constant 2 : index
    %c6_183 = arith.constant 6 : index
    %c0_184 = arith.constant 0 : index
    %c0_185 = arith.constant 0 : index
    %210 = vector.load %arg5[%c2_182, %c6_183, %c0_184, %c0_185] : memref<3x7x4x4xf32, #tpu.memory_space<vmem>>, vector<1x1x4x4xf32>
    %211 = vector.shape_cast %210 : vector<1x1x4x4xf32> to vector<4x4xf32>
    %cst_186 = arith.constant dense<0.000000e+00> : vector<4x30xf32>
    %212 = tpu.matmul %211, %209, %cst_186 {dimension_numbers = #tpu.dot_dimension_numbers<[1], [0], [0], [1], [0, 0, 1, 1], [], []>} : vector<4x4xf32>, vector<4x30xf32>, vector<4x30xf32> -> vector<4x30xf32>
    %213 = arith.addf %208, %212 : vector<4x30xf32>
    %c2_187 = arith.constant 2 : index
    %c0_188 = arith.constant 0 : index
    %c0_189 = arith.constant 0 : index
    %214 = vector.load %arg6[%c2_187, %c0_188, %c0_189] : memref<3x4x1xf32, #tpu.memory_space<vmem>>, vector<1x4x1xf32>
    %215 = vector.shape_cast %214 : vector<1x4x1xf32> to vector<4x1xf32>
    %216 = vector.broadcast %215 : vector<4x1xf32> to vector<4x30xf32>
    %217 = arith.addf %213, %216 : vector<4x30xf32>
    %cst_190 = arith.constant 0.000000e+00 : f32
    %218 = vector.broadcast %cst_190 : f32 to vector<4x30xf32>
    %219 = arith.cmpf ogt, %217, %218 : vector<4x30xf32>
    %cst_191 = arith.constant 0.000000e+00 : f32
    %220 = vector.broadcast %cst_191 : f32 to vector<4x30xf32>
    %221 = arith.minimumf %217, %220 : vector<4x30xf32>
    %222 = math.exp %221 : vector<4x30xf32>
    %cst_192 = arith.constant 1.000000e+00 : f32
    %223 = vector.broadcast %cst_192 : f32 to vector<4x30xf32>
    %224 = arith.subf %222, %223 : vector<4x30xf32>
    %225 = arith.select %219, %217, %224 : vector<4x30xi1>, vector<4x30xf32>
    %c2_193 = arith.constant 2 : index
    %c0_194 = arith.constant 0 : index
    %c0_195 = arith.constant 0 : index
    %226 = vector.load %arg7[%c2_193, %c0_194, %c0_195] : memref<3x4x4xf32, #tpu.memory_space<vmem>>, vector<1x4x4xf32>
    %227 = vector.shape_cast %226 : vector<1x4x4xf32> to vector<4x4xf32>
    %cst_196 = arith.constant dense<0.000000e+00> : vector<4x30xf32>
    %228 = tpu.matmul %227, %225, %cst_196 {dimension_numbers = #tpu.dot_dimension_numbers<[1], [0], [0], [1], [0, 0, 1, 1], [], []>} : vector<4x4xf32>, vector<4x30xf32>, vector<4x30xf32> -> vector<4x30xf32>
    %c2_197 = arith.constant 2 : index
    %c0_198 = arith.constant 0 : index
    %c0_199 = arith.constant 0 : index
    %229 = vector.load %arg8[%c2_197, %c0_198, %c0_199] : memref<3x4x1xf32, #tpu.memory_space<vmem>>, vector<1x4x1xf32>
    %230 = vector.shape_cast %229 : vector<1x4x1xf32> to vector<4x1xf32>
    %231 = vector.broadcast %230 : vector<4x1xf32> to vector<4x30xf32>
    %232 = arith.addf %228, %231 : vector<4x30xf32>
    %233 = arith.addf %232, %175 : vector<4x30xf32>
    %cst_200 = arith.constant 0.000000e+00 : f32
    %234 = vector.broadcast %cst_200 : f32 to vector<4x30xf32>
    %235 = arith.cmpf ogt, %233, %234 : vector<4x30xf32>
    %cst_201 = arith.constant 0.000000e+00 : f32
    %236 = vector.broadcast %cst_201 : f32 to vector<4x30xf32>
    %237 = arith.minimumf %233, %236 : vector<4x30xf32>
    %238 = math.exp %237 : vector<4x30xf32>
    %cst_202 = arith.constant 1.000000e+00 : f32
    %239 = vector.broadcast %cst_202 : f32 to vector<4x30xf32>
    %240 = arith.subf %238, %239 : vector<4x30xf32>
    %241 = arith.select %235, %233, %240 : vector<4x30xi1>, vector<4x30xf32>
    %c0_203 = arith.constant 0 : index
    %c0_204 = arith.constant 0 : index
    %c0_205 = arith.constant 0 : index
    %242 = vector.load %arg9[%c0_203, %c0_204, %c0_205] : memref<1x4x30xf32, #tpu.memory_space<vmem>>, vector<1x4x30xf32>
    %243 = vector.shape_cast %242 : vector<1x4x30xf32> to vector<4x30xf32>
    %244 = vector.shape_cast %241 : vector<4x30xf32> to vector<1x4x30xf32>
    tpu.vector_store %arg9[%c0_203, %c0_204, %c0_205], %244 {strides = array<i32>} : memref<1x4x30xf32, #tpu.memory_space<vmem>>, vector<1x4x30xf32>,
    return
  }
  func.func @transform_0(%arg0: i32) -> (i32, i32, i32) {
    %c0_i32 = arith.constant 0 : i32
    %c0_i32_0 = arith.constant 0 : i32
    %c0_i32_1 = arith.constant 0 : i32
    return %arg0, %c0_i32, %c0_i32_0 : i32, i32, i32
  }
  func.func @transform_1(%arg0: i32) -> (i32, i32, i32) {
    %c0_i32 = arith.constant 0 : i32
    %c0_i32_0 = arith.constant 0 : i32
    %c0_i32_1 = arith.constant 0 : i32
    %c0_i32_2 = arith.constant 0 : i32
    return %c0_i32, %c0_i32_0, %c0_i32_1 : i32, i32, i32
  }
  func.func @transform_2(%arg0: i32) -> (i32, i32, i32) {
    %c0_i32 = arith.constant 0 : i32
    %c0_i32_0 = arith.constant 0 : i32
    %c0_i32_1 = arith.constant 0 : i32
    %c0_i32_2 = arith.constant 0 : i32
    return %c0_i32, %c0_i32_0, %c0_i32_1 : i32, i32, i32
  }
  func.func @transform_3(%arg0: i32) -> (i32, i32) {
    %c0_i32 = arith.constant 0 : i32
    %c0_i32_0 = arith.constant 0 : i32
    %c0_i32_1 = arith.constant 0 : i32
    return %c0_i32, %c0_i32_0 : i32, i32
  }
  func.func @transform_4(%arg0: i32) -> (i32, i32, i32, i32) {
    %c0_i32 = arith.constant 0 : i32
    %c0_i32_0 = arith.constant 0 : i32
    %c0_i32_1 = arith.constant 0 : i32
    %c0_i32_2 = arith.constant 0 : i32
    %c0_i32_3 = arith.constant 0 : i32
    return %c0_i32, %c0_i32_0, %c0_i32_1, %c0_i32_2 : i32, i32, i32, i32
  }
  func.func @transform_5(%arg0: i32) -> (i32, i32, i32) {
    %c0_i32 = arith.constant 0 : i32
    %c0_i32_0 = arith.constant 0 : i32
    %c0_i32_1 = arith.constant 0 : i32
    %c0_i32_2 = arith.constant 0 : i32
    return %c0_i32, %c0_i32_0, %c0_i32_1 : i32, i32, i32
  }
  func.func @transform_6(%arg0: i32) -> (i32, i32, i32) {
    %c0_i32 = arith.constant 0 : i32
    %c0_i32_0 = arith.constant 0 : i32
    %c0_i32_1 = arith.constant 0 : i32
    %c0_i32_2 = arith.constant 0 : i32
    return %c0_i32, %c0_i32_0, %c0_i32_1 : i32, i32, i32
  }
  func.func @transform_7(%arg0: i32) -> (i32, i32, i32) {
    %c0_i32 = arith.constant 0 : i32
    %c0_i32_0 = arith.constant 0 : i32
    %c0_i32_1 = arith.constant 0 : i32
    %c0_i32_2 = arith.constant 0 : i32
    return %c0_i32, %c0_i32_0, %c0_i32_1 : i32, i32, i32
  }
  func.func @transform_8(%arg0: i32) -> (i32, i32, i32) {
    %c0_i32 = arith.constant 0 : i32
    %c0_i32_0 = arith.constant 0 : i32
    %c0_i32_1 = arith.constant 0 : i32
    return %arg0, %c0_i32, %c0_i32_0 : i32, i32, i32
  }
}

</mosaic_0001>

<llo_original>
// kernel: decoder_block_forward.1
$region0: #{decoder_block_forward.1}
  #allocation0 [shape = 'u32[]', space=smem, size = 0x4, offset = 0x4, fixed_abs, tag = 'smem constant byte address 0x4 - core index']
  #allocation1 [shape = 'u32[72,128]{1,0:T(1,128)}', space=vmem, size = 0x9000, scoped, tag = 'internal scratch']
  #allocation2 [shape = 'f32[4,128]{1,0:T(4,128)}', space=vmem, size = 0x800, scoped, tag = 'scratch operand']
  %s0 = inlined_call_operand.vmem [shape: f32[2,8,16], index: 0, kind: input, shape index: {}]
  %s1 = inlined_call_operand.vmem [shape: f32[4,4,8], index: 1, kind: input, shape index: {}]
  %s2 = inlined_call_operand.vmem [shape: f32[4,16,30], index: 2, kind: input, shape index: {}]
  %s3 = inlined_call_operand.vmem [shape: f32[4,1], index: 3, kind: input, shape index: {}]
  %s4 = inlined_call_operand.vmem [shape: f32[3,7,4,4], index: 4, kind: input, shape index: {}]
  %s5 = inlined_call_operand.vmem [shape: f32[3,4,1], index: 5, kind: input, shape index: {}]
  %s6 = inlined_call_operand.vmem [shape: f32[3,4,4], index: 6, kind: input, shape index: {}]
  %s7 = inlined_call_operand.vmem [shape: f32[3,4,1], index: 7, kind: input, shape index: {}]
  %s8 = inlined_call_operand.hbm [shape: f32[2,4,30], index: 8, kind: output, shape index: {}]
  %s9 = sld [smem:[#allocation0]]
  $region65: #{decoder_block_forward.1} parent=0
    _
  %s11 = ssub.s32 1, %s9
  %s12 = scalar_select 0, %s11, %s9
  $region1: #{decoder_block_forward.1} parent=0
    #allocation3 [shape = 'u8[4096]{0}', space=vmem, size = 0x1000, scoped, tag = 'output window, operand 0']
    #allocation4 [shape = 's32[2]{0}', space=sflag, size = 0x8, scoped, tag = 'scoped memory for decoder_block_forward.1']
    %13 = vsyncpa [#allocation4], 0
    %s14 = scalar_lea.sflag [#allocation4], 1
    %15 = vsyncpa %s14, 0
    loop: start=0, step=1, limit=4
    $region2: #{decoder_block_forward.1} parent=1 // loop_pre_header
      _
    $region3: #{decoder_block_forward.1} parent=1 // loop_header
      %s17 = sphi 0, %s21
      %p18 = scmp.ge.s32.totalorder %s17, 4
      %s27 = sphi 0, %s29
      %s30 = sphi 0, %s27
      %s31 = sphi 0, %s30
      %s47 = sphi 0, %s31
      %s51 = sphi 0, %s51
      %s53 = sphi 0, %s51
      %s54 = sphi 0, %s53
      %s68 = sphi 0, %s54
      %s72 = sphi 0, %s72
      %s74 = sphi 0, %s72
      %s75 = sphi 0, %s74
      %s89 = sphi 0, %s75
      %s93 = sphi 0, %s93
      %s95 = sphi 0, %s93
      %s96 = sphi 0, %s95
      %s110 = sphi 0, %s96
      %s114 = sphi 0, %s114
      %s116 = sphi 0, %s114
      %s117 = sphi 0, %s116
      %s131 = sphi 0, %s117
      %s135 = sphi 0, %s135
      %s137 = sphi 0, %s135
      %s138 = sphi 0, %s137
      %s152 = sphi 0, %s138
      %s156 = sphi 0, %s156
      %s158 = sphi 0, %s156
      %s159 = sphi 0, %s158
      %s173 = sphi 0, %s159
      %s177 = sphi 0, %s177
      %s179 = sphi 0, %s177
      %s180 = sphi 0, %s179
      %s194 = sphi 0, %s180
      %s200 = sphi 0, %s202
      %s203 = sphi 0, %s200
      %s204 = sphi 0, %s203
      %s220 = sphi 0, %s204
    $region4: #{decoder_block_forward.1} parent=1 // loop_header_branch
      %20 = sbr.rel (%p18) target = $region8
    $region5: #{decoder_block_forward.1} parent=1 // loop_body
      %s22 = ssub.s32 %s17, 1
      %s23 = ssub.s32 %s17, 2
      %s24 = sadd.s32 %s17, 1
      %s25 = ssub.s32 %s17, %s24
      %p26 = scmp.eq.s32.totalorder %s25, 0
      %s28 = sadd.s32 %s27, 1
      %s29 = scalar_select %p26, %s27, %s28
      %p32 = pneg %p26
      %p33 = scmp.eq.s32.totalorder %s17, 1
      %p34 = por %p32, %p33
      %p35 = scmp.ne.s32.totalorder %s27, %s30
      %p36 = scmp.eq.s32.totalorder %s17, 0
      %p37 = por %p35, %p36
      %p38 = scmp.ne.s32.totalorder %s27, %s30
      %p39 = scmp.eq.s32.totalorder %s22, 1
      %p40 = por %p38, %p39
      %p41 = scmp.ne.s32.totalorder %s30, %s31
      %p42 = scmp.eq.s32.totalorder %s22, 0
      %p43 = por %p41, %p42
      %p44 = scmp.ne.s32.totalorder %s30, %s31
      %p45 = scmp.eq.s32.totalorder %s23, 1
      %p46 = por %p44, %p45
      %p48 = scmp.ne.s32.totalorder %s31, %s47
      %p49 = scmp.eq.s32.totalorder %s23, 0
      %p50 = por %p48, %p49
      %s52 = sadd.s32 %s51, 1
      %p55 = scmp.eq.s32.totalorder %s17, 1
      %p56 = scmp.ne.s32.totalorder %s51, %s53
      %p57 = scmp.eq.s32.totalorder %s17, 0
      %p58 = por %p56, %p57
      %p59 = scmp.ne.s32.totalorder %s51, %s53
      %p60 = scmp.eq.s32.totalorder %s22, 1
      %p61 = por %p59, %p60
      %p62 = scmp.ne.s32.totalorder %s53, %s54
      %p63 = scmp.eq.s32.totalorder %s22, 0
      %p64 = por %p62, %p63
      %p65 = scmp.ne.s32.totalorder %s53, %s54
      %p66 = scmp.eq.s32.totalorder %s23, 1
      %p67 = por %p65, %p66
      %p69 = scmp.ne.s32.totalorder %s54, %s68
      %p70 = scmp.eq.s32.totalorder %s23, 0
      %p71 = por %p69, %p70
      %s73 = sadd.s32 %s72, 1
      %p76 = scmp.eq.s32.totalorder %s17, 1
      %p77 = scmp.ne.s32.totalorder %s72, %s74
      %p78 = scmp.eq.s32.totalorder %s17, 0
      %p79 = por %p77, %p78
      %p80 = scmp.ne.s32.totalorder %s72, %s74
      %p81 = scmp.eq.s32.totalorder %s22, 1
      %p82 = por %p80, %p81
      %p83 = scmp.ne.s32.totalorder %s74, %s75
      %p84 = scmp.eq.s32.totalorder %s22, 0
      %p85 = por %p83, %p84
      %p86 = scmp.ne.s32.totalorder %s74, %s75
      %p87 = scmp.eq.s32.totalorder %s23, 1
      %p88 = por %p86, %p87
      %p90 = scmp.ne.s32.totalorder %s75, %s89
      %p91 = scmp.eq.s32.totalorder %s23, 0
      %p92 = por %p90, %p91
      %s94 = sadd.s32 %s93, 1
      %p97 = scmp.eq.s32.totalorder %s17, 1
      %p98 = scmp.ne.s32.totalorder %s93, %s95
      %p99 = scmp.eq.s32.totalorder %s17, 0
      %p100 = por %p98, %p99
      %p101 = scmp.ne.s32.totalorder %s93, %s95
      %p102 = scmp.eq.s32.totalorder %s22, 1
      %p103 = por %p101, %p102
      %p104 = scmp.ne.s32.totalorder %s95, %s96
      %p105 = scmp.eq.s32.totalorder %s22, 0
      %p106 = por %p104, %p105
      %p107 = scmp.ne.s32.totalorder %s95, %s96
      %p108 = scmp.eq.s32.totalorder %s23, 1
      %p109 = por %p107, %p108
      %p111 = scmp.ne.s32.totalorder %s96, %s110
      %p112 = scmp.eq.s32.totalorder %s23, 0
      %p113 = por %p111, %p112
      %s115 = sadd.s32 %s114, 1
      %p118 = scmp.eq.s32.totalorder %s17, 1
      %p119 = scmp.ne.s32.totalorder %s114, %s116
      %p120 = scmp.eq.s32.totalorder %s17, 0
      %p121 = por %p119, %p120
      %p122 = scmp.ne.s32.totalorder %s114, %s116
      %p123 = scmp.eq.s32.totalorder %s22, 1
      %p124 = por %p122, %p123
      %p125 = scmp.ne.s32.totalorder %s116, %s117
      %p126 = scmp.eq.s32.totalorder %s22, 0
      %p127 = por %p125, %p126
      %p128 = scmp.ne.s32.totalorder %s116, %s117
      %p129 = scmp.eq.s32.totalorder %s23, 1
      %p130 = por %p128, %p129
      %p132 = scmp.ne.s32.totalorder %s117, %s131
      %p133 = scmp.eq.s32.totalorder %s23, 0
      %p134 = por %p132, %p133
      %s136 = sadd.s32 %s135, 1
      %p139 = scmp.eq.s32.totalorder %s17, 1
      %p140 = scmp.ne.s32.totalorder %s135, %s137
      %p141 = scmp.eq.s32.totalorder %s17, 0
      %p142 = por %p140, %p141
      %p143 = scmp.ne.s32.totalorder %s135, %s137
      %p144 = scmp.eq.s32.totalorder %s22, 1
      %p145 = por %p143, %p144
      %p146 = scmp.ne.s32.totalorder %s137, %s138
      %p147 = scmp.eq.s32.totalorder %s22, 0
      %p148 = por %p146, %p147
      %p149 = scmp.ne.s32.totalorder %s137, %s138
      %p150 = scmp.eq.s32.totalorder %s23, 1
      %p151 = por %p149, %p150
      %p153 = scmp.ne.s32.totalorder %s138, %s152
      %p154 = scmp.eq.s32.totalorder %s23, 0
      %p155 = por %p153, %p154
      %s157 = sadd.s32 %s156, 1
      %p160 = scmp.eq.s32.totalorder %s17, 1
      %p161 = scmp.ne.s32.totalorder %s156, %s158
      %p162 = scmp.eq.s32.totalorder %s17, 0
      %p163 = por %p161, %p162
      %p164 = scmp.ne.s32.totalorder %s156, %s158
      %p165 = scmp.eq.s32.totalorder %s22, 1
      %p166 = por %p164, %p165
      %p167 = scmp.ne.s32.totalorder %s158, %s159
      %p168 = scmp.eq.s32.totalorder %s22, 0
      %p169 = por %p167, %p168
      %p170 = scmp.ne.s32.totalorder %s158, %s159
      %p171 = scmp.eq.s32.totalorder %s23, 1
      %p172 = por %p170, %p171
      %p174 = scmp.ne.s32.totalorder %s159, %s173
      %p175 = scmp.eq.s32.totalorder %s23, 0
      %p176 = por %p174, %p175
      %s178 = sadd.s32 %s177, 1
      %p181 = scmp.eq.s32.totalorder %s17, 1
      %p182 = scmp.ne.s32.totalorder %s177, %s179
      %p183 = scmp.eq.s32.totalorder %s17, 0
      %p184 = por %p182, %p183
      %p185 = scmp.ne.s32.totalorder %s177, %s179
      %p186 = scmp.eq.s32.totalorder %s22, 1
      %p187 = por %p185, %p186
      %p188 = scmp.ne.s32.totalorder %s179, %s180
      %p189 = scmp.eq.s32.totalorder %s22, 0
      %p190 = por %p188, %p189
      %p191 = scmp.ne.s32.totalorder %s179, %s180
      %p192 = scmp.eq.s32.totalorder %s23, 1
      %p193 = por %p191, %p192
      %p195 = scmp.ne.s32.totalorder %s180, %s194
      %p196 = scmp.eq.s32.totalorder %s23, 0
      %p197 = por %p195, %p196
      %s198 = ssub.s32 %s17, %s24
      %p199 = scmp.eq.s32.totalorder %s198, 0
      %s201 = sadd.s32 %s200, 1
      %s202 = scalar_select %p199, %s200, %s201
      %p205 = pneg %p199
      %p206 = scmp.eq.s32.totalorder %s17, 1
      %p207 = por %p205, %p206
      %p208 = scmp.ne.s32.totalorder %s200, %s203
      %p209 = scmp.eq.s32.totalorder %s17, 0
      %p210 = por %p208, %p209
      %p211 = scmp.ne.s32.totalorder %s200, %s203
      %p212 = scmp.eq.s32.totalorder %s22, 1
      %p213 = por %p211, %p212
      %p214 = scmp.ne.s32.totalorder %s203, %s204
      %p215 = scmp.eq.s32.totalorder %s22, 0
      %p216 = por %p214, %p215
      %p217 = scmp.ne.s32.totalorder %s203, %s204
      %p218 = scmp.eq.s32.totalorder %s23, 1
      %p219 = por %p217, %p218
      %p221 = scmp.ne.s32.totalorder %s204, %s220
      %p222 = scmp.eq.s32.totalorder %s23, 0
      %p223 = por %p221, %p222
      %p224 = scmp.le.s32.totalorder 1, %s17
      %p225 = scmp.lt.s32.totalorder %s17, 3
      %p226 = pnand %p224, %p225
      %p227 = pneg %p226
      // Predicated region
      $region9: #{decoder_block_forward.1} parent=5 // pred_check
        _
      $region10: #{decoder_block_forward.1} parent=5 // pred_check_branch
        %229 = sbr.rel (%p226) target = $region12
      $region11: #{decoder_block_forward.1} parent=5 // pred_region
        %s230 = ssub.s32 %s17, 1
        // Predicated region
        $region13: #{decoder_block_forward.1} parent=11 // pred_check
          %p231 = pneg %p64
        $region14: #{decoder_block_forward.1} parent=11 // pred_check_branch
          %233 = sbr.rel (%p231) target = $region16
        $region15: #{decoder_block_forward.1} parent=11 // pred_region
          _
        $region16: #{decoder_block_forward.1} parent=11 // pred_fallthru
          _
        // Predicated region
        $region17: #{decoder_block_forward.1} parent=11 // pred_check
          %p234 = pneg %p85
        $region18: #{decoder_block_forward.1} parent=11 // pred_check_branch
          %236 = sbr.rel (%p234) target = $region20
        $region19: #{decoder_block_forward.1} parent=11 // pred_region
          _
        $region20: #{decoder_block_forward.1} parent=11 // pred_fallthru
          _
        // Predicated region
        $region21: #{decoder_block_forward.1} parent=11 // pred_check
          %p237 = pneg %p106
        $region22: #{decoder_block_forward.1} parent=11 // pred_check_branch
          %239 = sbr.rel (%p237) target = $region24
        $region23: #{decoder_block_forward.1} parent=11 // pred_region
          _
        $region24: #{decoder_block_forward.1} parent=11 // pred_fallthru
          _
        // Predicated region
        $region25: #{decoder_block_forward.1} parent=11 // pred_check
          %p240 = pneg %p127
        $region26: #{decoder_block_forward.1} parent=11 // pred_check_branch
          %242 = sbr.rel (%p240) target = $region28
        $region27: #{decoder_block_forward.1} parent=11 // pred_region
          _
        $region28: #{decoder_block_forward.1} parent=11 // pred_fallthru
          _
        // Predicated region
        $region29: #{decoder_block_forward.1} parent=11 // pred_check
          %p243 = pneg %p148
        $region30: #{decoder_block_forward.1} parent=11 // pred_check_branch
          %245 = sbr.rel (%p243) target = $region32
        $region31: #{decoder_block_forward.1} parent=11 // pred_region
          _
        $region32: #{decoder_block_forward.1} parent=11 // pred_fallthru
          _
        // Predicated region
        $region33: #{decoder_block_forward.1} parent=11 // pred_check
          %p246 = pneg %p169
        $region34: #{decoder_block_forward.1} parent=11 // pred_check_branch
          %248 = sbr.rel (%p246) target = $region36
        $region35: #{decoder_block_forward.1} parent=11 // pred_region
          _
        $region36: #{decoder_block_forward.1} parent=11 // pred_fallthru
          _
        // Predicated region
        $region37: #{decoder_block_forward.1} parent=11 // pred_check
          %p249 = pneg %p190
        $region38: #{decoder_block_forward.1} parent=11 // pred_check_branch
          %251 = sbr.rel (%p249) target = $region40
        $region39: #{decoder_block_forward.1} parent=11 // pred_region
          _
        $region40: #{decoder_block_forward.1} parent=11 // pred_fallthru
          _
      $region12: #{decoder_block_forward.1} parent=5 // pred_fallthru
        _
      %p252 = scmp.lt.s32.totalorder %s17, 2
      // Predicated region
      $region41: #{decoder_block_forward.1} parent=5 // pred_check
        %p253 = pneg %p252
      $region42: #{decoder_block_forward.1} parent=5 // pred_check_branch
        %255 = sbr.rel (%p253) target = $region44
      $region43: #{decoder_block_forward.1} parent=5 // pred_region
        // Predicated region
        $region45: #{decoder_block_forward.1} parent=43 // pred_check
          %p256 = pneg %p37
        $region46: #{decoder_block_forward.1} parent=43 // pred_check_branch
          %258 = sbr.rel (%p256) target = $region48
        $region47: #{decoder_block_forward.1} parent=43 // pred_region
          %p259 = scmp.lt.s32.totalorder %s17, 1
          %s260 = scalar_select %p259, %s17, 1
          %s261 = smul.addr %s260, 8
          %s262 = scalar_lea.vmem %s0, %s261
        $region48: #{decoder_block_forward.1} parent=43 // pred_fallthru
          _
      $region44: #{decoder_block_forward.1} parent=5 // pred_fallthru
        _
      %p263 = scmp.le.s32.totalorder 1, %s17
      %p264 = scmp.lt.s32.totalorder %s17, 3
      %p265 = pnand %p263, %p264
      %p266 = pneg %p265
      // Predicated region
      $region49: #{decoder_block_forward.1} parent=5 // pred_check
        _
      $region50: #{decoder_block_forward.1} parent=5 // pred_check_branch
        %268 = sbr.rel (%p265) target = $region52
      $region51: #{decoder_block_forward.1} parent=5 // pred_region
        %s269 = ssub.s32 %s17, 1
        %p270 = scmp.lt.s32.totalorder %s22, 1
        %s271 = scalar_select %p270, %s22, 1
        %s272 = smul.addr %s271, 8
        %s273 = scalar_lea.vmem %s0, %s272
        %p274 = pneg %p43
        %p275 = pneg %p40
        %p276 = pneg %p64
        %p277 = pneg %p61
        %p278 = pneg %p85
        %p279 = pneg %p82
        %p280 = pneg %p106
        %p281 = pneg %p103
        %p282 = pneg %p127
        %p283 = pneg %p124
        %p284 = pneg %p148
        %p285 = pneg %p145
        %p286 = pneg %p169
        %p287 = pneg %p166
        %p288 = pneg %p190
        %p289 = pneg %p187
        %p290 = pneg %p216
        %p291 = pneg %p213
        %s292 = sand.u32 %s203, 1
        %s293 = scalar_lea.sflag [#allocation4], %s292
        %s294 = sand.u32 %s203, 1
        %s295 = smul.addr %s294, 4
        %s296 = scalar_lea.vmem [#allocation3], %s295
        %p297 = scmp.lt.s32.totalorder %s22, 1
        %s298 = scalar_select %p297, %s22, 1
        %s299 = smul.addr %s298, 8
        %s300 = scalar_lea.vmem %s0, %s299
        %301 = vst [vmem:[#allocation2] sm:$0xf] 0.0
        %v302 = vld [vmem:[%s300] sm:$0xff]
        %v303 = vld [vmem:[%s2] sm:$0xff]
        %v304 = vld [vmem:[%s2 + $0x8] sm:$0xff]
        %vm305 = vcmask 130048
        %v307 = vsel %vm305, %v302, 0
        %309 = vmatpush.msra.mxu0 0.0
        %310 = vmatpush.msra.mxu0 0.0
        %311 = vmatpush.msra.mxu0 0.0
        %312 = vmatpush.msra.mxu0 0.0
        %313 = vmatpush.msra.mxu0 0.0
        %314 = vmatpush.msra.mxu0 0.0
        %315 = vmatpush.msra.mxu0 0.0
        %316 = vmatpush.msra.mxu0 0.0
        %317 = vmatpush.msra.mxu0 0.0
        %318 = vmatpush.msra.mxu0 0.0
        %319 = vmatpush.msra.mxu0 0.0
        %320 = vmatpush.msra.mxu0 0.0
        %321 = vmatpush.msra.mxu0 0.0
        %322 = vmatpush.msra.mxu0 0.0
        %323 = vmatpush.msra.mxu0 %v304
        %324 = vmatpush.msra.mxu0 %v303
        %325 = vmatmul.f32.gmra.mxu0 %v307
        %v326 = vpop.f32.mrf.mxu0
        %v327 = vadd.f32 0.0, %v326
        %328 = vdwg.mxu0
        %v329 = vld [vmem:[%s1] sm:$0xf]
        %s330 = scalar_lea.vmem %s2, 16
        %v331 = vld [vmem:[%s330] sm:$0xff]
        %v332 = vld [vmem:[%s330 + $0x8] sm:$0xff]
        %333 = vmatpush.msra.mxu0 0.0
        %334 = vmatpush.msra.mxu0 0.0
        %335 = vmatpush.msra.mxu0 0.0
        %336 = vmatpush.msra.mxu0 0.0
        %337 = vmatpush.msra.mxu0 0.0
        %338 = vmatpush.msra.mxu0 0.0
        %339 = vmatpush.msra.mxu0 0.0
        %340 = vmatpush.msra.mxu0 0.0
        %341 = vmatpush.msra.mxu0 0.0
        %342 = vmatpush.msra.mxu0 0.0
        %343 = vmatpush.msra.mxu0 0.0
        %344 = vmatpush.msra.mxu0 0.0
        %345 = vmatpush.msra.mxu0 0.0
        %346 = vmatpush.msra.mxu0 0.0
        %347 = vmatpush.msra.mxu0 %v332
        %348 = vmatpush.msra.mxu0 %v331
        %349 = vmatmul.f32.gmra.mxu0 %v307
        %v350 = vpop.f32.mrf.mxu0
        %v351 = vadd.f32 0.0, %v350
        %352 = vdwg.mxu0
        %s353 = scalar_lea.vmem %s1, 4
        %v354 = vld [vmem:[%s353] sm:$0xf]
        %vm355 = vcmask 64512
        %v357 = vsel %vm355, %v354, 0
        %359 = vmatpush.msra.mxu0 0.0
        %360 = vmatpush.msra.mxu0 0.0
        %361 = vmatpush.msra.mxu0 0.0
        %362 = vmatpush.msra.mxu0 0.0
        %363 = vmatpush.msra.mxu0 0.0
        %364 = vmatpush.msra.mxu0 0.0
        %365 = vmatpush.msra.mxu0 0.0
        %366 = vmatpush.msra.mxu0 0.0
        %367 = vmatpush.msra.mxu0 0.0
        %368 = vmatpush.msra.mxu0 0.0
        %369 = vmatpush.msra.mxu0 0.0
        %370 = vmatpush.msra.mxu0 0.0
        %371 = vmatpush.msra.mxu0 0.0
        %372 = vmatpush.msra.mxu0 0.0
        %373 = vmatpush.msra.mxu0 0.0
        %374 = vmatpush.msra.mxu0 %v351
        %375 = vmatmul.f32.gmra.mxu0 %v357
        %v376 = vpop.f32.mrf.mxu0
        %v377 = vadd.f32 0.0, %v376
        %378 = vdwg.mxu0
        %v380 = vsel %vm355, %v329, 0
        %382 = vmatpush.msra.mxu0 0.0
        %383 = vmatpush.msra.mxu0 0.0
        %384 = vmatpush.msra.mxu0 0.0
        %385 = vmatpush.msra.mxu0 0.0
        %386 = vmatpush.msra.mxu0 0.0
        %387 = vmatpush.msra.mxu0 0.0
        %388 = vmatpush.msra.mxu0 0.0
        %389 = vmatpush.msra.mxu0 0.0
        %390 = vmatpush.msra.mxu0 0.0
        %391 = vmatpush.msra.mxu0 0.0
        %392 = vmatpush.msra.mxu0 0.0
        %393 = vmatpush.msra.mxu0 0.0
        %394 = vmatpush.msra.mxu0 0.0
        %395 = vmatpush.msra.mxu0 0.0
        %396 = vmatpush.msra.mxu0 0.0
        %397 = vmatpush.msra.mxu0 %v327
        %398 = vmatmul.f32.gmra.mxu0 %v380
        %v399 = vpop.f32.mrf.mxu0
        %v400 = vadd.f32 %v377, %v399
        %401 = vdwg.mxu0
        %s402 = scalar_lea.vmem %s2, 32
        %v403 = vld [vmem:[%s402] sm:$0xff]
        %v404 = vld [vmem:[%s402 + $0x8] sm:$0xff]
        %405 = vmatpush.msra.mxu0 0.0
        %406 = vmatpush.msra.mxu0 0.0
        %407 = vmatpush.msra.mxu0 0.0
        %408 = vmatpush.msra.mxu0 0.0
        %409 = vmatpush.msra.mxu0 0.0
        %410 = vmatpush.msra.mxu0 0.0
        %411 = vmatpush.msra.mxu0 0.0
        %412 = vmatpush.msra.mxu0 0.0
        %413 = vmatpush.msra.mxu0 0.0
        %414 = vmatpush.msra.mxu0 0.0
        %415 = vmatpush.msra.mxu0 0.0
        %416 = vmatpush.msra.mxu0 0.0
        %417 = vmatpush.msra.mxu0 0.0
        %418 = vmatpush.msra.mxu0 0.0
        %419 = vmatpush.msra.mxu0 %v404
        %420 = vmatpush.msra.mxu0 %v403
        %421 = vmatmul.f32.gmra.mxu0 %v307
        %v422 = vpop.f32.mrf.mxu0
        %v423 = vadd.f32 0.0, %v422
        %424 = vdwg.mxu0
        %s425 = scalar_lea.vmem %s1, 8
        %v426 = vld [vmem:[%s425] sm:$0xf]
        %v428 = vsel %vm355, %v426, 0
        %430 = vmatpush.msra.mxu0 0.0
        %431 = vmatpush.msra.mxu0 0.0
        %432 = vmatpush.msra.mxu0 0.0
        %433 = vmatpush.msra.mxu0 0.0
        %434 = vmatpush.msra.mxu0 0.0
        %435 = vmatpush.msra.mxu0 0.0
        %436 = vmatpush.msra.mxu0 0.0
        %437 = vmatpush.msra.mxu0 0.0
        %438 = vmatpush.msra.mxu0 0.0
        %439 = vmatpush.msra.mxu0 0.0
        %440 = vmatpush.msra.mxu0 0.0
        %441 = vmatpush.msra.mxu0 0.0
        %442 = vmatpush.msra.mxu0 0.0
        %443 = vmatpush.msra.mxu0 0.0
        %444 = vmatpush.msra.mxu0 0.0
        %445 = vmatpush.msra.mxu0 %v423
        %446 = vmatmul.f32.gmra.mxu0 %v428
        %v447 = vpop.f32.mrf.mxu0
        %v448 = vadd.f32 0.0, %v447
        %449 = vdwg.mxu0
        %v450 = vadd.f32 %v400, %v448
        %s451 = scalar_lea.vmem %s2, 48
        %v452 = vld [vmem:[%s451] sm:$0xff]
        %v453 = vld [vmem:[%s451 + $0x8] sm:$0xff]
        %454 = vmatpush.msra.mxu0 0.0
        %455 = vmatpush.msra.mxu0 0.0
        %456 = vmatpush.msra.mxu0 0.0
        %457 = vmatpush.msra.mxu0 0.0
        %458 = vmatpush.msra.mxu0 0.0
        %459 = vmatpush.msra.mxu0 0.0
        %460 = vmatpush.msra.mxu0 0.0
        %461 = vmatpush.msra.mxu0 0.0
        %462 = vmatpush.msra.mxu0 0.0
        %463 = vmatpush.msra.mxu0 0.0
        %464 = vmatpush.msra.mxu0 0.0
        %465 = vmatpush.msra.mxu0 0.0
        %466 = vmatpush.msra.mxu0 0.0
        %467 = vmatpush.msra.mxu0 0.0
        %468 = vmatpush.msra.mxu0 %v453
        %469 = vmatpush.msra.mxu0 %v452
        %470 = vmatmul.f32.gmra.mxu0 %v307
        %v471 = vpop.f32.mrf.mxu0
        %v472 = vadd.f32 0.0, %v471
        %473 = vdwg.mxu0
        %s474 = scalar_lea.vmem %s1, 12
        %v475 = vld [vmem:[%s474] sm:$0xf]
        %v477 = vsel %vm355, %v475, 0
        %479 = vmatpush.msra.mxu0 0.0
        %480 = vmatpush.msra.mxu0 0.0
        %481 = vmatpush.msra.mxu0 0.0
        %482 = vmatpush.msra.mxu0 0.0
        %483 = vmatpush.msra.mxu0 0.0
        %484 = vmatpush.msra.mxu0 0.0
        %485 = vmatpush.msra.mxu0 0.0
        %486 = vmatpush.msra.mxu0 0.0
        %487 = vmatpush.msra.mxu0 0.0
        %488 = vmatpush.msra.mxu0 0.0
        %489 = vmatpush.msra.mxu0 0.0
        %490 = vmatpush.msra.mxu0 0.0
        %491 = vmatpush.msra.mxu0 0.0
        %492 = vmatpush.msra.mxu0 0.0
        %493 = vmatpush.msra.mxu0 0.0
        %494 = vmatpush.msra.mxu0 %v472
        %495 = vmatmul.f32.gmra.mxu0 %v477
        %v496 = vpop.f32.mrf.mxu0
        %v497 = vadd.f32 0.0, %v496
        %498 = vdwg.mxu0
        %v499 = vadd.f32 %v450, %v497
        %v500 = vld [vmem:[%s3] sm:$0xf]
        %502 = vset.pattern.permute.xlu0 0
        %503 = vperm.xlu0 %502, %v500
        %v504 = vpop.permute.xlu0 %503
        %v506 = vadd.f32 %v499, %v504
        %vm507 = vcmp.gt.f32.partialorder %v506, 0.0
        %v508 = vmin.f32 %v506, 0.0
        %v509 = vmul.f32 %v508, 1.442695
        %v510 = vpow.pop %v509
        %v511 = vsub.f32 %v510, 1.0
        %v512 = vsel %vm507, %v506, %v511
        %514 = vrot.lane.b32.xlu0 %v512, 32
        %v515 = vpop.permute.xlu0 %514
        %vm517 = vcmask 503040
        %518 = vst.msk [vmem:[#allocation2] sm:$0xf] %vm517, %v515
        %v519 = vld [vmem:[#allocation2] sm:$0xf]
        %v520 = vld [vmem:[%s4] sm:$0xf]
        %s521 = scalar_lea.vmem %s4, 4
        %v522 = vld [vmem:[%s521] sm:$0xf]
        %524 = vrot.lane.b32.xlu0 %v519, 98
        %v525 = vpop.permute.xlu0 %524
        %vm526 = vcmask 31744
        %v528 = vsel %vm526, %v522, 0
        %vm530 = vcmask 1043456
        %v531 = vsel %vm530, %v525, 0
        %533 = vmatpush.msra.mxu0 0.0
        %534 = vmatpush.msra.mxu0 0.0
        %535 = vmatpush.msra.mxu0 0.0
        %536 = vmatpush.msra.mxu0 0.0
        %537 = vmatpush.msra.mxu0 0.0
        %538 = vmatpush.msra.mxu0 0.0
        %539 = vmatpush.msra.mxu0 0.0
        %540 = vmatpush.msra.mxu0 0.0
        %541 = vmatpush.msra.mxu0 0.0
        %542 = vmatpush.msra.mxu0 0.0
        %543 = vmatpush.msra.mxu0 0.0
        %544 = vmatpush.msra.mxu0 0.0
        %545 = vmatpush.msra.mxu0 0.0
        %546 = vmatpush.msra.mxu0 0.0
        %547 = vmatpush.msra.mxu0 0.0
        %548 = vmatpush.msra.mxu0 %v531
        %549 = vmatmul.f32.gmra.mxu0 %v528
        %v550 = vpop.f32.mrf.mxu0
        %v551 = vadd.f32 0.0, %v550
        %552 = vdwg.mxu0
        %553 = vrot.lane.b32.xlu0 %v519, 99
        %v554 = vpop.permute.xlu0 %553
        %v556 = vsel %vm526, %v520, 0
        %v558 = vsel %vm530, %v554, 0
        %560 = vmatpush.msra.mxu0 0.0
        %561 = vmatpush.msra.mxu0 0.0
        %562 = vmatpush.msra.mxu0 0.0
        %563 = vmatpush.msra.mxu0 0.0
        %564 = vmatpush.msra.mxu0 0.0
        %565 = vmatpush.msra.mxu0 0.0
        %566 = vmatpush.msra.mxu0 0.0
        %567 = vmatpush.msra.mxu0 0.0
        %568 = vmatpush.msra.mxu0 0.0
        %569 = vmatpush.msra.mxu0 0.0
        %570 = vmatpush.msra.mxu0 0.0
        %571 = vmatpush.msra.mxu0 0.0
        %572 = vmatpush.msra.mxu0 0.0
        %573 = vmatpush.msra.mxu0 0.0
        %574 = vmatpush.msra.mxu0 0.0
        %575 = vmatpush.msra.mxu0 %v558
        %576 = vmatmul.f32.gmra.mxu0 %v556
        %v577 = vpop.f32.mrf.mxu0
        %v578 = vadd.f32 %v551, %v577
        %579 = vdwg.mxu0
        %s580 = scalar_lea.vmem %s4, 8
        %v581 = vld [vmem:[%s580] sm:$0xf]
        %582 = vrot.lane.b32.xlu0 %v519, 97
        %v583 = vpop.permute.xlu0 %582
        %v585 = vsel %vm526, %v581, 0
        %v587 = vsel %vm530, %v583, 0
        %589 = vmatpush.msra.mxu0 0.0
        %590 = vmatpush.msra.mxu0 0.0
        %591 = vmatpush.msra.mxu0 0.0
        %592 = vmatpush.msra.mxu0 0.0
        %593 = vmatpush.msra.mxu0 0.0
        %594 = vmatpush.msra.mxu0 0.0
        %595 = vmatpush.msra.mxu0 0.0
        %596 = vmatpush.msra.mxu0 0.0
        %597 = vmatpush.msra.mxu0 0.0
        %598 = vmatpush.msra.mxu0 0.0
        %599 = vmatpush.msra.mxu0 0.0
        %600 = vmatpush.msra.mxu0 0.0
        %601 = vmatpush.msra.mxu0 0.0
        %602 = vmatpush.msra.mxu0 0.0
        %603 = vmatpush.msra.mxu0 0.0
        %604 = vmatpush.msra.mxu0 %v587
        %605 = vmatmul.f32.gmra.mxu0 %v585
        %v606 = vpop.f32.mrf.mxu0
        %v607 = vadd.f32 0.0, %v606
        %608 = vdwg.mxu0
        %v609 = vadd.f32 %v578, %v607
        %s610 = scalar_lea.vmem %s4, 12
        %v611 = vld [vmem:[%s610] sm:$0xf]
        %612 = vrot.lane.b32.xlu0 %v519, 96
        %v613 = vpop.permute.xlu0 %612
        %v615 = vsel %vm526, %v611, 0
        %v617 = vsel %vm530, %v613, 0
        %619 = vmatpush.msra.mxu0 0.0
        %620 = vmatpush.msra.mxu0 0.0
        %621 = vmatpush.msra.mxu0 0.0
        %622 = vmatpush.msra.mxu0 0.0
        %623 = vmatpush.msra.mxu0 0.0
        %624 = vmatpush.msra.mxu0 0.0
        %625 = vmatpush.msra.mxu0 0.0
        %626 = vmatpush.msra.mxu0 0.0
        %627 = vmatpush.msra.mxu0 0.0
        %628 = vmatpush.msra.mxu0 0.0
        %629 = vmatpush.msra.mxu0 0.0
        %630 = vmatpush.msra.mxu0 0.0
        %631 = vmatpush.msra.mxu0 0.0
        %632 = vmatpush.msra.mxu0 0.0
        %633 = vmatpush.msra.mxu0 0.0
        %634 = vmatpush.msra.mxu0 %v617
        %635 = vmatmul.f32.gmra.mxu0 %v615
        %v636 = vpop.f32.mrf.mxu0
        %v637 = vadd.f32 0.0, %v636
        %638 = vdwg.mxu0
        %v639 = vadd.f32 %v609, %v637
        %s640 = scalar_lea.vmem %s4, 16
        %v641 = vld [vmem:[%s640] sm:$0xf]
        %642 = vrot.lane.b32.xlu0 %v519, 95
        %v643 = vpop.permute.xlu0 %642
        %v645 = vsel %vm526, %v641, 0
        %v647 = vsel %vm530, %v643, 0
        %649 = vmatpush.msra.mxu0 0.0
        %650 = vmatpush.msra.mxu0 0.0
        %651 = vmatpush.msra.mxu0 0.0
        %652 = vmatpush.msra.mxu0 0.0
        %653 = vmatpush.msra.mxu0 0.0
        %654 = vmatpush.msra.mxu0 0.0
        %655 = vmatpush.msra.mxu0 0.0
        %656 = vmatpush.msra.mxu0 0.0
        %657 = vmatpush.msra.mxu0 0.0
        %658 = vmatpush.msra.mxu0 0.0
        %659 = vmatpush.msra.mxu0 0.0
        %660 = vmatpush.msra.mxu0 0.0
        %661 = vmatpush.msra.mxu0 0.0
        %662 = vmatpush.msra.mxu0 0.0
        %663 = vmatpush.msra.mxu0 0.0
        %664 = vmatpush.msra.mxu0 %v647
        %665 = vmatmul.f32.gmra.mxu0 %v645
        %v666 = vpop.f32.mrf.mxu0
        %v667 = vadd.f32 0.0, %v666
        %668 = vdwg.mxu0
        %v669 = vadd.f32 %v639, %v667
        %s670 = scalar_lea.vmem %s4, 20
        %v671 = vld [vmem:[%s670] sm:$0xf]
        %672 = vrot.lane.b32.xlu0 %v519, 94
        %v673 = vpop.permute.xlu0 %672
        %v675 = vsel %vm526, %v671, 0
        %v677 = vsel %vm530, %v673, 0
        %679 = vmatpush.msra.mxu0 0.0
        %680 = vmatpush.msra.mxu0 0.0
        %681 = vmatpush.msra.mxu0 0.0
        %682 = vmatpush.msra.mxu0 0.0
        %683 = vmatpush.msra.mxu0 0.0
        %684 = vmatpush.msra.mxu0 0.0
        %685 = vmatpush.msra.mxu0 0.0
        %686 = vmatpush.msra.mxu0 0.0
        %687 = vmatpush.msra.mxu0 0.0
        %688 = vmatpush.msra.mxu0 0.0
        %689 = vmatpush.msra.mxu0 0.0
        %690 = vmatpush.msra.mxu0 0.0
        %691 = vmatpush.msra.mxu0 0.0
        %692 = vmatpush.msra.mxu0 0.0
        %693 = vmatpush.msra.mxu0 0.0
        %694 = vmatpush.msra.mxu0 %v677
        %695 = vmatmul.f32.gmra.mxu0 %v675
        %v696 = vpop.f32.mrf.mxu0
        %v697 = vadd.f32 0.0, %v696
        %698 = vdwg.mxu0
        %v699 = vadd.f32 %v669, %v697
        %s700 = scalar_lea.vmem %s4, 24
        %v701 = vld [vmem:[%s700] sm:$0xf]
        %702 = vrot.lane.b32.xlu0 %v519, 93
        %v703 = vpop.permute.xlu0 %702
        %v705 = vsel %vm526, %v701, 0
        %v707 = vsel %vm530, %v703, 0
        %709 = vmatpush.msra.mxu0 0.0
        %710 = vmatpush.msra.mxu0 0.0
        %711 = vmatpush.msra.mxu0 0.0
        %712 = vmatpush.msra.mxu0 0.0
        %713 = vmatpush.msra.mxu0 0.0
        %714 = vmatpush.msra.mxu0 0.0
        %715 = vmatpush.msra.mxu0 0.0
        %716 = vmatpush.msra.mxu0 0.0
        %717 = vmatpush.msra.mxu0 0.0
        %718 = vmatpush.msra.mxu0 0.0
        %719 = vmatpush.msra.mxu0 0.0
        %720 = vmatpush.msra.mxu0 0.0
        %721 = vmatpush.msra.mxu0 0.0
        %722 = vmatpush.msra.mxu0 0.0
        %723 = vmatpush.msra.mxu0 0.0
        %724 = vmatpush.msra.mxu0 %v707
        %725 = vmatmul.f32.gmra.mxu0 %v705
        %v726 = vpop.f32.mrf.mxu0
        %v727 = vadd.f32 0.0, %v726
        %728 = vdwg.mxu0
        %v729 = vadd.f32 %v699, %v727
        %v730 = vld [vmem:[%s5] sm:$0xf]
        %732 = vset.pattern.permute.xlu0 0
        %733 = vperm.xlu0 %732, %v730
        %v734 = vpop.permute.xlu0 %733
        %v736 = vadd.f32 %v729, %v734
        %vm737 = vcmp.gt.f32.partialorder %v736, 0.0
        %v738 = vmin.f32 %v736, 0.0
        %v739 = vmul.f32 %v738, 1.442695
        %v740 = vpow.pop %v739
        %v741 = vsub.f32 %v740, 1.0
        %v742 = vsel %vm737, %v736, %v741
        %v743 = vld [vmem:[%s6] sm:$0xf]
        %v744 = vld [vmem:[%s7] sm:$0xf]
        %746 = vset.pattern.permute.xlu0 0
        %747 = vperm.xlu0 %746, %v744
        %v748 = vpop.permute.xlu0 %747
        %v751 = vsel %vm526, %v743, 0
        %v754 = vsel %vm530, %v742, 0
        %756 = vmatpush.msra.mxu0 0.0
        %757 = vmatpush.msra.mxu0 0.0
        %758 = vmatpush.msra.mxu0 0.0
        %759 = vmatpush.msra.mxu0 0.0
        %760 = vmatpush.msra.mxu0 0.0
        %761 = vmatpush.msra.mxu0 0.0
        %762 = vmatpush.msra.mxu0 0.0
        %763 = vmatpush.msra.mxu0 0.0
        %764 = vmatpush.msra.mxu0 0.0
        %765 = vmatpush.msra.mxu0 0.0
        %766 = vmatpush.msra.mxu0 0.0
        %767 = vmatpush.msra.mxu0 0.0
        %768 = vmatpush.msra.mxu0 0.0
        %769 = vmatpush.msra.mxu0 0.0
        %770 = vmatpush.msra.mxu0 0.0
        %771 = vmatpush.msra.mxu0 %v754
        %772 = vmatmul.f32.gmra.mxu0 %v751
        %v773 = vpop.f32.mrf.mxu0
        %v774 = vadd.f32 %v748, %v773
        %775 = vdwg.mxu0
        %v776 = vadd.f32 %v774, %v512
        %vm777 = vcmp.gt.f32.partialorder %v776, 0.0
        %v778 = vmin.f32 %v776, 0.0
        %v779 = vmul.f32 %v778, 1.442695
        %v780 = vpow.pop %v779
        %v781 = vsub.f32 %v780, 1.0
        %v782 = vsel %vm777, %v776, %v781
        %784 = vrot.lane.b32.xlu0 %v782, 32
        %v785 = vpop.permute.xlu0 %784
        %787 = vst.msk [vmem:[#allocation2] sm:$0xf] %vm517, %v785
        %v788 = vld [vmem:[#allocation2] sm:$0xf]
        %s789 = scalar_lea.vmem %s4, 28
        %v790 = vld [vmem:[%s789] sm:$0xf]
        %s791 = scalar_lea.vmem %s4, 32
        %v792 = vld [vmem:[%s791] sm:$0xf]
        %794 = vrot.lane.b32.xlu0 %v788, 102
        %v795 = vpop.permute.xlu0 %794
        %v797 = vsel %vm526, %v792, 0
        %v799 = vsel %vm530, %v795, 0
        %801 = vmatpush.msra.mxu0 0.0
        %802 = vmatpush.msra.mxu0 0.0
        %803 = vmatpush.msra.mxu0 0.0
        %804 = vmatpush.msra.mxu0 0.0
        %805 = vmatpush.msra.mxu0 0.0
        %806 = vmatpush.msra.mxu0 0.0
        %807 = vmatpush.msra.mxu0 0.0
        %808 = vmatpush.msra.mxu0 0.0
        %809 = vmatpush.msra.mxu0 0.0
        %810 = vmatpush.msra.mxu0 0.0
        %811 = vmatpush.msra.mxu0 0.0
        %812 = vmatpush.msra.mxu0 0.0
        %813 = vmatpush.msra.mxu0 0.0
        %814 = vmatpush.msra.mxu0 0.0
        %815 = vmatpush.msra.mxu0 0.0
        %816 = vmatpush.msra.mxu0 %v799
        %817 = vmatmul.f32.gmra.mxu0 %v797
        %v818 = vpop.f32.mrf.mxu0
        %v819 = vadd.f32 0.0, %v818
        %820 = vdwg.mxu0
        %821 = vrot.lane.b32.xlu0 %v788, 105
        %v822 = vpop.permute.xlu0 %821
        %v824 = vsel %vm526, %v790, 0
        %v826 = vsel %vm530, %v822, 0
        %828 = vmatpush.msra.mxu0 0.0
        %829 = vmatpush.msra.mxu0 0.0
        %830 = vmatpush.msra.mxu0 0.0
        %831 = vmatpush.msra.mxu0 0.0
        %832 = vmatpush.msra.mxu0 0.0
        %833 = vmatpush.msra.mxu0 0.0
        %834 = vmatpush.msra.mxu0 0.0
        %835 = vmatpush.msra.mxu0 0.0
        %836 = vmatpush.msra.mxu0 0.0
        %837 = vmatpush.msra.mxu0 0.0
        %838 = vmatpush.msra.mxu0 0.0
        %839 = vmatpush.msra.mxu0 0.0
        %840 = vmatpush.msra.mxu0 0.0
        %841 = vmatpush.msra.mxu0 0.0
        %842 = vmatpush.msra.mxu0 0.0
        %843 = vmatpush.msra.mxu0 %v826
        %844 = vmatmul.f32.gmra.mxu0 %v824
        %v845 = vpop.f32.mrf.mxu0
        %v846 = vadd.f32 %v819, %v845
        %847 = vdwg.mxu0
        %s848 = scalar_lea.vmem %s4, 36
        %v849 = vld [vmem:[%s848] sm:$0xf]
        %850 = vrot.lane.b32.xlu0 %v788, 99
        %v851 = vpop.permute.xlu0 %850
        %v853 = vsel %vm526, %v849, 0
        %v855 = vsel %vm530, %v851, 0
        %857 = vmatpush.msra.mxu0 0.0
        %858 = vmatpush.msra.mxu0 0.0
        %859 = vmatpush.msra.mxu0 0.0
        %860 = vmatpush.msra.mxu0 0.0
        %861 = vmatpush.msra.mxu0 0.0
        %862 = vmatpush.msra.mxu0 0.0
        %863 = vmatpush.msra.mxu0 0.0
        %864 = vmatpush.msra.mxu0 0.0
        %865 = vmatpush.msra.mxu0 0.0
        %866 = vmatpush.msra.mxu0 0.0
        %867 = vmatpush.msra.mxu0 0.0
        %868 = vmatpush.msra.mxu0 0.0
        %869 = vmatpush.msra.mxu0 0.0
        %870 = vmatpush.msra.mxu0 0.0
        %871 = vmatpush.msra.mxu0 0.0
        %872 = vmatpush.msra.mxu0 %v855
        %873 = vmatmul.f32.gmra.mxu0 %v853
        %v874 = vpop.f32.mrf.mxu0
        %v875 = vadd.f32 0.0, %v874
        %876 = vdwg.mxu0
        %v877 = vadd.f32 %v846, %v875
        %s878 = scalar_lea.vmem %s4, 40
        %v879 = vld [vmem:[%s878] sm:$0xf]
        %880 = vrot.lane.b32.xlu0 %v788, 96
        %v881 = vpop.permute.xlu0 %880
        %v883 = vsel %vm526, %v879, 0
        %v885 = vsel %vm530, %v881, 0
        %887 = vmatpush.msra.mxu0 0.0
        %888 = vmatpush.msra.mxu0 0.0
        %889 = vmatpush.msra.mxu0 0.0
        %890 = vmatpush.msra.mxu0 0.0
        %891 = vmatpush.msra.mxu0 0.0
        %892 = vmatpush.msra.mxu0 0.0
        %893 = vmatpush.msra.mxu0 0.0
        %894 = vmatpush.msra.mxu0 0.0
        %895 = vmatpush.msra.mxu0 0.0
        %896 = vmatpush.msra.mxu0 0.0
        %897 = vmatpush.msra.mxu0 0.0
        %898 = vmatpush.msra.mxu0 0.0
        %899 = vmatpush.msra.mxu0 0.0
        %900 = vmatpush.msra.mxu0 0.0
        %901 = vmatpush.msra.mxu0 0.0
        %902 = vmatpush.msra.mxu0 %v885
        %903 = vmatmul.f32.gmra.mxu0 %v883
        %v904 = vpop.f32.mrf.mxu0
        %v905 = vadd.f32 0.0, %v904
        %906 = vdwg.mxu0
        %v907 = vadd.f32 %v877, %v905
        %s908 = scalar_lea.vmem %s4, 44
        %v909 = vld [vmem:[%s908] sm:$0xf]
        %910 = vrot.lane.b32.xlu0 %v788, 93
        %v911 = vpop.permute.xlu0 %910
        %v913 = vsel %vm526, %v909, 0
        %v915 = vsel %vm530, %v911, 0
        %917 = vmatpush.msra.mxu0 0.0
        %918 = vmatpush.msra.mxu0 0.0
        %919 = vmatpush.msra.mxu0 0.0
        %920 = vmatpush.msra.mxu0 0.0
        %921 = vmatpush.msra.mxu0 0.0
        %922 = vmatpush.msra.mxu0 0.0
        %923 = vmatpush.msra.mxu0 0.0
        %924 = vmatpush.msra.mxu0 0.0
        %925 = vmatpush.msra.mxu0 0.0
        %926 = vmatpush.msra.mxu0 0.0
        %927 = vmatpush.msra.mxu0 0.0
        %928 = vmatpush.msra.mxu0 0.0
        %929 = vmatpush.msra.mxu0 0.0
        %930 = vmatpush.msra.mxu0 0.0
        %931 = vmatpush.msra.mxu0 0.0
        %932 = vmatpush.msra.mxu0 %v915
        %933 = vmatmul.f32.gmra.mxu0 %v913
        %v934 = vpop.f32.mrf.mxu0
        %v935 = vadd.f32 0.0, %v934
        %936 = vdwg.mxu0
        %v937 = vadd.f32 %v907, %v935
        %s938 = scalar_lea.vmem %s4, 48
        %v939 = vld [vmem:[%s938] sm:$0xf]
        %940 = vrot.lane.b32.xlu0 %v788, 90
        %v941 = vpop.permute.xlu0 %940
        %v943 = vsel %vm526, %v939, 0
        %v945 = vsel %vm530, %v941, 0
        %947 = vmatpush.msra.mxu0 0.0
        %948 = vmatpush.msra.mxu0 0.0
        %949 = vmatpush.msra.mxu0 0.0
        %950 = vmatpush.msra.mxu0 0.0
        %951 = vmatpush.msra.mxu0 0.0
        %952 = vmatpush.msra.mxu0 0.0
        %953 = vmatpush.msra.mxu0 0.0
        %954 = vmatpush.msra.mxu0 0.0
        %955 = vmatpush.msra.mxu0 0.0
        %956 = vmatpush.msra.mxu0 0.0
        %957 = vmatpush.msra.mxu0 0.0
        %958 = vmatpush.msra.mxu0 0.0
        %959 = vmatpush.msra.mxu0 0.0
        %960 = vmatpush.msra.mxu0 0.0
        %961 = vmatpush.msra.mxu0 0.0
        %962 = vmatpush.msra.mxu0 %v945
        %963 = vmatmul.f32.gmra.mxu0 %v943
        %v964 = vpop.f32.mrf.mxu0
        %v965 = vadd.f32 0.0, %v964
        %966 = vdwg.mxu0
        %v967 = vadd.f32 %v937, %v965
        %s968 = scalar_lea.vmem %s4, 52
        %v969 = vld [vmem:[%s968] sm:$0xf]
        %970 = vrot.lane.b32.xlu0 %v788, 87
        %v971 = vpop.permute.xlu0 %970
        %v973 = vsel %vm526, %v969, 0
        %v975 = vsel %vm530, %v971, 0
        %977 = vmatpush.msra.mxu0 0.0
        %978 = vmatpush.msra.mxu0 0.0
        %979 = vmatpush.msra.mxu0 0.0
        %980 = vmatpush.msra.mxu0 0.0
        %981 = vmatpush.msra.mxu0 0.0
        %982 = vmatpush.msra.mxu0 0.0
        %983 = vmatpush.msra.mxu0 0.0
        %984 = vmatpush.msra.mxu0 0.0
        %985 = vmatpush.msra.mxu0 0.0
        %986 = vmatpush.msra.mxu0 0.0
        %987 = vmatpush.msra.mxu0 0.0
        %988 = vmatpush.msra.mxu0 0.0
        %989 = vmatpush.msra.mxu0 0.0
        %990 = vmatpush.msra.mxu0 0.0
        %991 = vmatpush.msra.mxu0 0.0
        %992 = vmatpush.msra.mxu0 %v975
        %993 = vmatmul.f32.gmra.mxu0 %v973
        %v994 = vpop.f32.mrf.mxu0
        %v995 = vadd.f32 0.0, %v994
        %996 = vdwg.mxu0
        %v997 = vadd.f32 %v967, %v995
        %s998 = scalar_lea.vmem %s5, 4
        %v999 = vld [vmem:[%s998] sm:$0xf]
        %1001 = vset.pattern.permute.xlu0 0
        %1002 = vperm.xlu0 %1001, %v999
        %v1003 = vpop.permute.xlu0 %1002
        %v1005 = vadd.f32 %v997, %v1003
        %vm1006 = vcmp.gt.f32.partialorder %v1005, 0.0
        %v1007 = vmin.f32 %v1005, 0.0
        %v1008 = vmul.f32 %v1007, 1.442695
        %v1009 = vpow.pop %v1008
        %v1010 = vsub.f32 %v1009, 1.0
        %v1011 = vsel %vm1006, %v1005, %v1010
        %s1012 = scalar_lea.vmem %s6, 4
        %v1013 = vld [vmem:[%s1012] sm:$0xf]
        %s1014 = scalar_lea.vmem %s7, 4
        %v1015 = vld [vmem:[%s1014] sm:$0xf]
        %1017 = vset.pattern.permute.xlu0 0
        %1018 = vperm.xlu0 %1017, %v1015
        %v1019 = vpop.permute.xlu0 %1018
        %v1022 = vsel %vm526, %v1013, 0
        %v1025 = vsel %vm530, %v1011, 0
        %1027 = vmatpush.msra.mxu0 0.0
        %1028 = vmatpush.msra.mxu0 0.0
        %1029 = vmatpush.msra.mxu0 0.0
        %1030 = vmatpush.msra.mxu0 0.0
        %1031 = vmatpush.msra.mxu0 0.0
        %1032 = vmatpush.msra.mxu0 0.0
        %1033 = vmatpush.msra.mxu0 0.0
        %1034 = vmatpush.msra.mxu0 0.0
        %1035 = vmatpush.msra.mxu0 0.0
        %1036 = vmatpush.msra.mxu0 0.0
        %1037 = vmatpush.msra.mxu0 0.0
        %1038 = vmatpush.msra.mxu0 0.0
        %1039 = vmatpush.msra.mxu0 0.0
        %1040 = vmatpush.msra.mxu0 0.0
        %1041 = vmatpush.msra.mxu0 0.0
        %1042 = vmatpush.msra.mxu0 %v1025
        %1043 = vmatmul.f32.gmra.mxu0 %v1022
        %v1044 = vpop.f32.mrf.mxu0
        %v1045 = vadd.f32 %v1019, %v1044
        %1046 = vdwg.mxu0
        %v1047 = vadd.f32 %v1045, %v782
        %vm1048 = vcmp.gt.f32.partialorder %v1047, 0.0
        %v1049 = vmin.f32 %v1047, 0.0
        %v1050 = vmul.f32 %v1049, 1.442695
        %v1051 = vpow.pop %v1050
        %v1052 = vsub.f32 %v1051, 1.0
        %v1053 = vsel %vm1048, %v1047, %v1052
        %1055 = vrot.lane.b32.xlu0 %v1053, 32
        %v1056 = vpop.permute.xlu0 %1055
        %1058 = vst.msk [vmem:[#allocation2] sm:$0xf] %vm517, %v1056
        %v1059 = vld [vmem:[#allocation2] sm:$0xf]
        %s1060 = scalar_lea.vmem %s4, 56
        %v1061 = vld [vmem:[%s1060] sm:$0xf]
        %s1062 = scalar_lea.vmem %s4, 60
        %v1063 = vld [vmem:[%s1062] sm:$0xf]
        %1065 = vrot.lane.b32.xlu0 %v1059, 114
        %v1066 = vpop.permute.xlu0 %1065
        %v1068 = vsel %vm526, %v1063, 0
        %v1070 = vsel %vm530, %v1066, 0
        %1072 = vmatpush.msra.mxu0 0.0
        %1073 = vmatpush.msra.mxu0 0.0
        %1074 = vmatpush.msra.mxu0 0.0
        %1075 = vmatpush.msra.mxu0 0.0
        %1076 = vmatpush.msra.mxu0 0.0
        %1077 = vmatpush.msra.mxu0 0.0
        %1078 = vmatpush.msra.mxu0 0.0
        %1079 = vmatpush.msra.mxu0 0.0
        %1080 = vmatpush.msra.mxu0 0.0
        %1081 = vmatpush.msra.mxu0 0.0
        %1082 = vmatpush.msra.mxu0 0.0
        %1083 = vmatpush.msra.mxu0 0.0
        %1084 = vmatpush.msra.mxu0 0.0
        %1085 = vmatpush.msra.mxu0 0.0
        %1086 = vmatpush.msra.mxu0 0.0
        %1087 = vmatpush.msra.mxu0 %v1070
        %1088 = vmatmul.f32.gmra.mxu0 %v1068
        %v1089 = vpop.f32.mrf.mxu0
        %v1090 = vadd.f32 0.0, %v1089
        %1091 = vdwg.mxu0
        %1092 = vrot.lane.b32.xlu0 %v1059, 123
        %v1093 = vpop.permute.xlu0 %1092
        %v1095 = vsel %vm526, %v1061, 0
        %v1097 = vsel %vm530, %v1093, 0
        %1099 = vmatpush.msra.mxu0 0.0
        %1100 = vmatpush.msra.mxu0 0.0
        %1101 = vmatpush.msra.mxu0 0.0
        %1102 = vmatpush.msra.mxu0 0.0
        %1103 = vmatpush.msra.mxu0 0.0
        %1104 = vmatpush.msra.mxu0 0.0
        %1105 = vmatpush.msra.mxu0 0.0
        %1106 = vmatpush.msra.mxu0 0.0
        %1107 = vmatpush.msra.mxu0 0.0
        %1108 = vmatpush.msra.mxu0 0.0
        %1109 = vmatpush.msra.mxu0 0.0
        %1110 = vmatpush.msra.mxu0 0.0
        %1111 = vmatpush.msra.mxu0 0.0
        %1112 = vmatpush.msra.mxu0 0.0
        %1113 = vmatpush.msra.mxu0 0.0
        %1114 = vmatpush.msra.mxu0 %v1097
        %1115 = vmatmul.f32.gmra.mxu0 %v1095
        %v1116 = vpop.f32.mrf.mxu0
        %v1117 = vadd.f32 %v1090, %v1116
        %1118 = vdwg.mxu0
        %s1119 = scalar_lea.vmem %s4, 64
        %v1120 = vld [vmem:[%s1119] sm:$0xf]
        %1121 = vrot.lane.b32.xlu0 %v1059, 105
        %v1122 = vpop.permute.xlu0 %1121
        %v1124 = vsel %vm526, %v1120, 0
        %v1126 = vsel %vm530, %v1122, 0
        %1128 = vmatpush.msra.mxu0 0.0
        %1129 = vmatpush.msra.mxu0 0.0
        %1130 = vmatpush.msra.mxu0 0.0
        %1131 = vmatpush.msra.mxu0 0.0
        %1132 = vmatpush.msra.mxu0 0.0
        %1133 = vmatpush.msra.mxu0 0.0
        %1134 = vmatpush.msra.mxu0 0.0
        %1135 = vmatpush.msra.mxu0 0.0
        %1136 = vmatpush.msra.mxu0 0.0
        %1137 = vmatpush.msra.mxu0 0.0
        %1138 = vmatpush.msra.mxu0 0.0
        %1139 = vmatpush.msra.mxu0 0.0
        %1140 = vmatpush.msra.mxu0 0.0
        %1141 = vmatpush.msra.mxu0 0.0
        %1142 = vmatpush.msra.mxu0 0.0
        %1143 = vmatpush.msra.mxu0 %v1126
        %1144 = vmatmul.f32.gmra.mxu0 %v1124
        %v1145 = vpop.f32.mrf.mxu0
        %v1146 = vadd.f32 0.0, %v1145
        %1147 = vdwg.mxu0
        %v1148 = vadd.f32 %v1117, %v1146
        %s1149 = scalar_lea.vmem %s4, 68
        %v1150 = vld [vmem:[%s1149] sm:$0xf]
        %1151 = vrot.lane.b32.xlu0 %v1059, 96
        %v1152 = vpop.permute.xlu0 %1151
        %v1154 = vsel %vm526, %v1150, 0
        %v1156 = vsel %vm530, %v1152, 0
        %1158 = vmatpush.msra.mxu0 0.0
        %1159 = vmatpush.msra.mxu0 0.0
        %1160 = vmatpush.msra.mxu0 0.0
        %1161 = vmatpush.msra.mxu0 0.0
        %1162 = vmatpush.msra.mxu0 0.0
        %1163 = vmatpush.msra.mxu0 0.0
        %1164 = vmatpush.msra.mxu0 0.0
        %1165 = vmatpush.msra.mxu0 0.0
        %1166 = vmatpush.msra.mxu0 0.0
        %1167 = vmatpush.msra.mxu0 0.0
        %1168 = vmatpush.msra.mxu0 0.0
        %1169 = vmatpush.msra.mxu0 0.0
        %1170 = vmatpush.msra.mxu0 0.0
        %1171 = vmatpush.msra.mxu0 0.0
        %1172 = vmatpush.msra.mxu0 0.0
        %1173 = vmatpush.msra.mxu0 %v1156
        %1174 = vmatmul.f32.gmra.mxu0 %v1154
        %v1175 = vpop.f32.mrf.mxu0
        %v1176 = vadd.f32 0.0, %v1175
        %1177 = vdwg.mxu0
        %v1178 = vadd.f32 %v1148, %v1176
        %s1179 = scalar_lea.vmem %s4, 72
        %v1180 = vld [vmem:[%s1179] sm:$0xf]
        %1181 = vrot.lane.b32.xlu0 %v1059, 87
        %v1182 = vpop.permute.xlu0 %1181
        %v1184 = vsel %vm526, %v1180, 0
        %v1186 = vsel %vm530, %v1182, 0
        %1188 = vmatpush.msra.mxu0 0.0
        %1189 = vmatpush.msra.mxu0 0.0
        %1190 = vmatpush.msra.mxu0 0.0
        %1191 = vmatpush.msra.mxu0 0.0
        %1192 = vmatpush.msra.mxu0 0.0
        %1193 = vmatpush.msra.mxu0 0.0
        %1194 = vmatpush.msra.mxu0 0.0
        %1195 = vmatpush.msra.mxu0 0.0
        %1196 = vmatpush.msra.mxu0 0.0
        %1197 = vmatpush.msra.mxu0 0.0
        %1198 = vmatpush.msra.mxu0 0.0
        %1199 = vmatpush.msra.mxu0 0.0
        %1200 = vmatpush.msra.mxu0 0.0
        %1201 = vmatpush.msra.mxu0 0.0
        %1202 = vmatpush.msra.mxu0 0.0
        %1203 = vmatpush.msra.mxu0 %v1186
        %1204 = vmatmul.f32.gmra.mxu0 %v1184
        %v1205 = vpop.f32.mrf.mxu0
        %v1206 = vadd.f32 0.0, %v1205
        %1207 = vdwg.mxu0
        %v1208 = vadd.f32 %v1178, %v1206
        %s1209 = scalar_lea.vmem %s4, 76
        %v1210 = vld [vmem:[%s1209] sm:$0xf]
        %1211 = vrot.lane.b32.xlu0 %v1059, 78
        %v1212 = vpop.permute.xlu0 %1211
        %v1214 = vsel %vm526, %v1210, 0
        %v1216 = vsel %vm530, %v1212, 0
        %1218 = vmatpush.msra.mxu0 0.0
        %1219 = vmatpush.msra.mxu0 0.0
        %1220 = vmatpush.msra.mxu0 0.0
        %1221 = vmatpush.msra.mxu0 0.0
        %1222 = vmatpush.msra.mxu0 0.0
        %1223 = vmatpush.msra.mxu0 0.0
        %1224 = vmatpush.msra.mxu0 0.0
        %1225 = vmatpush.msra.mxu0 0.0
        %1226 = vmatpush.msra.mxu0 0.0
        %1227 = vmatpush.msra.mxu0 0.0
        %1228 = vmatpush.msra.mxu0 0.0
        %1229 = vmatpush.msra.mxu0 0.0
        %1230 = vmatpush.msra.mxu0 0.0
        %1231 = vmatpush.msra.mxu0 0.0
        %1232 = vmatpush.msra.mxu0 0.0
        %1233 = vmatpush.msra.mxu0 %v1216
        %1234 = vmatmul.f32.gmra.mxu0 %v1214
        %v1235 = vpop.f32.mrf.mxu0
        %v1236 = vadd.f32 0.0, %v1235
        %1237 = vdwg.mxu0
        %v1238 = vadd.f32 %v1208, %v1236
        %s1239 = scalar_lea.vmem %s4, 80
        %v1240 = vld [vmem:[%s1239] sm:$0xf]
        %1241 = vrot.lane.b32.xlu0 %v1059, 69
        %v1242 = vpop.permute.xlu0 %1241
        %v1244 = vsel %vm526, %v1240, 0
        %v1246 = vsel %vm530, %v1242, 0
        %1248 = vmatpush.msra.mxu0 0.0
        %1249 = vmatpush.msra.mxu0 0.0
        %1250 = vmatpush.msra.mxu0 0.0
        %1251 = vmatpush.msra.mxu0 0.0
        %1252 = vmatpush.msra.mxu0 0.0
        %1253 = vmatpush.msra.mxu0 0.0
        %1254 = vmatpush.msra.mxu0 0.0
        %1255 = vmatpush.msra.mxu0 0.0
        %1256 = vmatpush.msra.mxu0 0.0
        %1257 = vmatpush.msra.mxu0 0.0
        %1258 = vmatpush.msra.mxu0 0.0
        %1259 = vmatpush.msra.mxu0 0.0
        %1260 = vmatpush.msra.mxu0 0.0
        %1261 = vmatpush.msra.mxu0 0.0
        %1262 = vmatpush.msra.mxu0 0.0
        %1263 = vmatpush.msra.mxu0 %v1246
        %1264 = vmatmul.f32.gmra.mxu0 %v1244
        %v1265 = vpop.f32.mrf.mxu0
        %v1266 = vadd.f32 0.0, %v1265
        %1267 = vdwg.mxu0
        %v1268 = vadd.f32 %v1238, %v1266
        %s1269 = scalar_lea.vmem %s5, 8
        %v1270 = vld [vmem:[%s1269] sm:$0xf]
        %1272 = vset.pattern.permute.xlu0 0
        %1273 = vperm.xlu0 %1272, %v1270
        %v1274 = vpop.permute.xlu0 %1273
        %v1276 = vadd.f32 %v1268, %v1274
        %vm1277 = vcmp.gt.f32.partialorder %v1276, 0.0
        %v1278 = vmin.f32 %v1276, 0.0
        %v1279 = vmul.f32 %v1278, 1.442695
        %v1280 = vpow.pop %v1279
        %v1281 = vsub.f32 %v1280, 1.0
        %v1282 = vsel %vm1277, %v1276, %v1281
        %s1283 = scalar_lea.vmem %s6, 8
        %v1284 = vld [vmem:[%s1283] sm:$0xf]
        %s1285 = scalar_lea.vmem %s7, 8
        %v1286 = vld [vmem:[%s1285] sm:$0xf]
        %1288 = vset.pattern.permute.xlu0 0
        %1289 = vperm.xlu0 %1288, %v1286
        %v1290 = vpop.permute.xlu0 %1289
        %v1293 = vsel %vm526, %v1284, 0
        %v1296 = vsel %vm530, %v1282, 0
        %1298 = vmatpush.msra.mxu0 0.0
        %1299 = vmatpush.msra.mxu0 0.0
        %1300 = vmatpush.msra.mxu0 0.0
        %1301 = vmatpush.msra.mxu0 0.0
        %1302 = vmatpush.msra.mxu0 0.0
        %1303 = vmatpush.msra.mxu0 0.0
        %1304 = vmatpush.msra.mxu0 0.0
        %1305 = vmatpush.msra.mxu0 0.0
        %1306 = vmatpush.msra.mxu0 0.0
        %1307 = vmatpush.msra.mxu0 0.0
        %1308 = vmatpush.msra.mxu0 0.0
        %1309 = vmatpush.msra.mxu0 0.0
        %1310 = vmatpush.msra.mxu0 0.0
        %1311 = vmatpush.msra.mxu0 0.0
        %1312 = vmatpush.msra.mxu0 0.0
        %1313 = vmatpush.msra.mxu0 %v1296
        %1314 = vmatmul.f32.gmra.mxu0 %v1293
        %v1315 = vpop.f32.mrf.mxu0
        %v1316 = vadd.f32 %v1290, %v1315
        %1317 = vdwg.mxu0
        %v1318 = vadd.f32 %v1316, %v1053
        %vm1319 = vcmp.gt.f32.partialorder %v1318, 0.0
        %v1320 = vmin.f32 %v1318, 0.0
        %v1321 = vmul.f32 %v1320, 1.442695
        %v1322 = vpow.pop %v1321
        %v1323 = vsub.f32 %v1322, 1.0
        %v1324 = vsel %vm1319, %v1318, %v1323
        %vm1325 = vcmask 240640
        %1326 = vst.msk [vmem:[%s296] sm:$0xf] %vm1325, %v1324
        %s1327 = sand.u32 %s203, 1
        %s1328 = scalar_lea.sflag [#allocation4], %s1327
        %s1329 = sand.u32 %s203, 1
        %s1330 = smul.addr %s1329, 4
        %s1331 = scalar_lea.vmem [#allocation3], %s1330
        // Predicated region
        $region53: #{decoder_block_forward.1} parent=51 // pred_check
          %p1332 = pneg %p213
        $region54: #{decoder_block_forward.1} parent=51 // pred_check_branch
          %1334 = sbr.rel (%p1332) target = $region56
        $region55: #{decoder_block_forward.1} parent=51 // pred_region
          %1336 = vsyncadd %s1328, 0
          %s1337 = smul.addr %s22, 4
          %s1338 = scalar_lea.hbm %s8, %s1337
          %s1340 = sshll.u32 %s1331, 4
          %s1341 = int_to_ptr.vmem [resolvable:$true] %s1340
          %s1342 = sshll.u32 %s1338, 4
          %s1343 = int_to_ptr.hbm [resolvable:$true] %s1342
          %1345 = dma.vmem_to_hbm [thread:$0]  %s1341, 64, %s1343, %s1328
        $region56: #{decoder_block_forward.1} parent=51 // pred_fallthru
          _
      $region52: #{decoder_block_forward.1} parent=5 // pred_fallthru
        _
      %p1346 = scmp.le.s32.totalorder 2, %s17
      // Predicated region
      $region57: #{decoder_block_forward.1} parent=5 // pred_check
        %p1347 = pneg %p1346
      $region58: #{decoder_block_forward.1} parent=5 // pred_check_branch
        %1349 = sbr.rel (%p1347) target = $region60
      $region59: #{decoder_block_forward.1} parent=5 // pred_region
        %s1350 = ssub.s32 %s17, 2
        // Predicated region
        $region61: #{decoder_block_forward.1} parent=59 // pred_check
          %p1351 = pneg %p219
        $region62: #{decoder_block_forward.1} parent=59 // pred_check_branch
          %1353 = sbr.rel (%p1351) target = $region64
        $region63: #{decoder_block_forward.1} parent=59 // pred_region
          %s1354 = sand.u32 %s204, 1
          %s1355 = scalar_lea.sflag [#allocation4], %s1354
          %s1356 = sand.u32 %s204, 1
          %s1357 = smul.addr %s1356, 4
          %s1358 = scalar_lea.vmem [#allocation3], %s1357
          %1360 = dma.done %s1355, 64
        $region64: #{decoder_block_forward.1} parent=59 // pred_fallthru
          _
      $region60: #{decoder_block_forward.1} parent=5 // pred_fallthru
        _
    $region6: #{decoder_block_forward.1} parent=1 // loop_footer
      %s21 = sadd.s32 1, %s17
    $region7: #{decoder_block_forward.1} parent=1 // loop_footer_branch
      %16 = sbr.rel target = $region3
    $region8: #{decoder_block_forward.1} parent=1 // loop_exit
      _
    %1361 = vsyncpa [#allocation4], 1
    %s1362 = scalar_lea.sflag [#allocation4], 1
    %1363 = vsyncpa %s1362, 1

</llo_original>
